<compile_context>
chip_gen: v7x
topology: tpu7x:2x2x1
jax: 0.10.0
libtpu: 0.0.40
codegen_flags: <defaults>
</compile_context>

<pallas_src>
import functools

import jax
import jax.numpy as jnp
from jax import lax
from jax.experimental import pallas as pl
from jax.experimental.pallas import tpu as pltpu

# Dims from the PyTorch module. The source builds vocab from an empty set,
# so we pick a small synthetic vocabulary.
VOCAB_SIZE = 32
EMBED_DIM = 16
HIDDEN_SIZE = 128
OUTPUT_SIZE = 1


def _round_up(x, m):
    return (x + m - 1) // m * m


def _sigmoid_1eup(x):
    # sigmoid(x) == 0.5*(tanh(0.5*x)+1): one EUP tanh pass instead of a
    # possible exp + reciprocal pair; the single EUP slot sits directly on the
    # serial critical path of the recurrence.
    return 0.5 * (jnp.tanh(0.5 * x) + 1.0)


def _text_rnn_kernel(xg_ref, whh_ref, bias_ref, fcw_ref, fcb_ref, out_ref,
                     h_scr, c_scr, s_scr, *, seq_len, needs_mask):
    """One (batch-tile, T-chunk) grid step of the LSTM recurrence.

    xg_ref : (t_chunk, b_tile, 4H) bf16  pre-gathered x-path gates (pipelined)
    whh_ref: (H, 4H) bf16               W_hh^T
    bias_ref: (1, 4H) f32               b_ih + b_hh (added in f32 on use)
    h/c/s scratch: (b_tile, H) f32, carried across the "arbitrary" T axis.
    """
    j = pl.program_id(1)
    t_chunk, b_tile, _ = xg_ref.shape
    hidden = whh_ref.shape[0]

    @pl.when(j == 0)
    def _():
        h_scr[...] = jnp.zeros_like(h_scr)
        c_scr[...] = jnp.zeros_like(c_scr)
        s_scr[...] = jnp.zeros_like(s_scr)

    # Loop-invariant loads hoisted out of the recurrence.
    whh = whh_ref[...]            # bf16 MXU operand
    bias = bias_ref[...]          # f32, added at consumption time

    # Two independent batch sub-streams: stream B's MXU push can hide stream
    # A's EUP/VPU tail.  Only split when each half keeps >= 8 sublanes.
    n_stream = 2 if b_tile >= 16 else 1
    half = b_tile // n_stream

    hs = [h_scr[pl.ds(k * half, half), :] for k in range(n_stream)]
    cs = [c_scr[pl.ds(k * half, half), :] for k in range(n_stream)]
    ss = [s_scr[pl.ds(k * half, half), :] for k in range(n_stream)]

    # TODO(synk): pin W_hh in MXU weight regs via pltpu.matmul_push_rhs /
    # matmul_acc_lhs (and MRB accumulation on v7x) instead of re-pushing the
    # (H, 4H) RHS every timestep.
    for t in range(t_chunk):
        for k in range(n_stream):
            xg_t = xg_ref[t, pl.ds(k * half, half), :].astype(jnp.float32) + bias
            gates = xg_t + jnp.dot(hs[k].astype(jnp.bfloat16), whh,
                                   preferred_element_type=jnp.float32)
            i_g = _sigmoid_1eup(gates[:, 0:hidden])
            f_g = _sigmoid_1eup(gates[:, hidden:2 * hidden])
            g_g = jnp.tanh(gates[:, 2 * hidden:3 * hidden])
            o_g = _sigmoid_1eup(gates[:, 3 * hidden:4 * hidden])
            c_new = f_g * cs[k] + i_g * g_g
            h_new = o_g * jnp.tanh(c_new)
            if needs_mask:
                # Only the last (ragged) T-chunk has padded timesteps.
                valid = (j * t_chunk + t) < seq_len
                cs[k] = jnp.where(valid, c_new, cs[k])
                hs[k] = jnp.where(valid, h_new, hs[k])
                ss[k] = ss[k] + jnp.where(valid, h_new, 0.0)
            else:
                cs[k] = c_new
                hs[k] = h_new
                ss[k] = ss[k] + h_new        # torch.sum(out, dim=1), online

    for k in range(n_stream):
        h_scr[pl.ds(k * half, half), :] = hs[k]
        c_scr[pl.ds(k * half, half), :] = cs[k]
        s_scr[pl.ds(k * half, half), :] = ss[k]

    # Finalize: Linear(H -> 1) + sigmoid as a VPU/XLU reduction (an N=1 MXU
    # pass would be lane-sparse waste).
    @pl.when(j == pl.num_programs(1) - 1)
    def _():
        logits = (jnp.sum(s_scr[...] * fcw_ref[...], axis=-1, keepdims=True)
                  + fcb_ref[0])
        out_ref[...] = _sigmoid_1eup(logits)


def init_params(key):
    keys = jax.random.split(key, 7)
    s = 0.1
    return {
        "emb":  s * jax.random.normal(keys[0], (VOCAB_SIZE, EMBED_DIM), jnp.float32),
        "w_ih": s * jax.random.normal(keys[1], (4 * HIDDEN_SIZE, EMBED_DIM), jnp.float32),
        "w_hh": s * jax.random.normal(keys[2], (4 * HIDDEN_SIZE, HIDDEN_SIZE), jnp.float32),
        "b_ih": s * jax.random.normal(keys[3], (4 * HIDDEN_SIZE,), jnp.float32),
        "b_hh": s * jax.random.normal(keys[4], (4 * HIDDEN_SIZE,), jnp.float32),
        "fc_w": s * jax.random.normal(keys[5], (OUTPUT_SIZE, HIDDEN_SIZE), jnp.float32),
        "fc_b": s * jax.random.normal(keys[6], (OUTPUT_SIZE,), jnp.float32),
    }


@jax.jit
def text_rnn_attention_forward(x_ids, params):
    B, T = x_ids.shape
    H = HIDDEN_SIZE
    G = 4 * H

    # --- batch tiling: >=8 rows/tile; force nb >= 2 when B >= 16 so the
    # "parallel" axis lands work on both v7x TensorCores.
    # TODO(synk): raise the 128-row cap to 256 on v6e/v7x for very large B to
    # fill the 256-row MXU (keep 128 on v5e).
    if B >= 16:
        b_tile = min(128, _round_up((B + 1) // 2, 8))
    else:
        b_tile = _round_up(B, 8)
    b_pad = _round_up(B, b_tile)
    nb = b_pad // b_tile

    # --- time chunking: recurrence runs over an "arbitrary" T grid axis with
    # h/c/sum carried in VMEM scratch, so VMEM no longer scales with full T.
    t_chunk = min(T, 16)
    t_pad = _round_up(T, t_chunk)
    nt = t_pad // t_chunk
    needs_mask = (t_pad != T)

    # --- weight / input prep (trace-time) ---
    # Fold the embedding into W_ih and pre-gather per-token x-path gates; they
    # become a bf16 double-buffered input instead of a one-hot matmul + big
    # f32 scratch.  (Out-of-range ids would clamp under jnp.take, unlike
    # nn.Embedding which errors.)
    xtab = params["emb"] @ params["w_ih"].T                       # (V, 4H) f32
    xg = jnp.take(xtab, x_ids, axis=0).astype(jnp.bfloat16)       # (B, T, 4H)
    xg = jnp.pad(xg, ((0, b_pad - B), (0, t_pad - T), (0, 0)))
    xg = xg.reshape(nb, b_tile, t_pad, G).transpose(0, 2, 1, 3)   # (nb, t_pad, b_tile, G)

    whh_t = params["w_hh"].T.astype(jnp.bfloat16)                 # (H, 4H)
    bias = (params["b_ih"] + params["b_hh"]).reshape(1, G)        # f32
    fcw = params["fc_w"].reshape(1, H)                            # f32 row
    fcb = params["fc_b"].reshape(OUTPUT_SIZE)                     # SMEM scalar

    # VMEM footprint: xg double buffer + weights + carried state (+ headroom).
    vmem_bytes = (2 * t_chunk * b_tile * G * 2
                  + H * G * 2 + G * 4 + H * 4
                  + 3 * b_tile * H * 4
                  + 2 * b_tile * OUTPUT_SIZE * 4)
    vmem_limit = min(100 * 1024 * 1024, max(8 * 1024 * 1024, 2 * vmem_bytes))

    grid_spec = pltpu.PrefetchScalarGridSpec(
        num_scalar_prefetch=0,
        grid=(nb, nt),
        in_specs=[
            pl.BlockSpec((pl.Squeezed(), t_chunk, b_tile, G),
                         lambda i, j: (i, j, 0, 0)),              # bf16 x-gates
            pl.BlockSpec((H, G), lambda i, j: (0, 0)),            # W_hh^T (bf16)
            pl.BlockSpec((1, G), lambda i, j: (0, 0)),            # b_ih + b_hh
            pl.BlockSpec((1, H), lambda i, j: (0, 0)),            # fc weight row
            pl.BlockSpec(memory_space=pltpu.MemorySpace.SMEM),    # fc bias
        ],
        out_specs=pl.BlockSpec((b_tile, OUTPUT_SIZE), lambda i, j: (i, 0)),
        scratch_shapes=[
            pltpu.VMEM((b_tile, H), jnp.float32),    # h (carried over T)
            pltpu.VMEM((b_tile, H), jnp.float32),    # c (carried over T)
            pltpu.VMEM((b_tile, H), jnp.float32),    # sum_t h_t
        ],
    )

    kernel = functools.partial(_text_rnn_kernel, seq_len=T, needs_mask=needs_mask)

    out = pl.pallas_call(
        kernel,
        out_shape=jax.ShapeDtypeStruct((b_pad, OUTPUT_SIZE), jnp.float32),
        grid_spec=grid_spec,
        compiler_params=pltpu.CompilerParams(
            dimension_semantics=("parallel", "arbitrary"),
            vmem_limit_bytes=vmem_limit),
    )(xg, whh_t, bias, fcw, fcb)

    return out[:B]


def reference_forward(x_ids, params):
    """Pure-JAX f32 reference matching PyTorch LSTM semantics."""
    H = HIDDEN_SIZE
    x = params["emb"][x_ids]                                      # (B, T, E)
    B = x_ids.shape[0]

    def cell(carry, x_t):
        h, c = carry
        gates = (x_t @ params["w_ih"].T + params["b_ih"]
                 + h @ params["w_hh"].T + params["b_hh"])
        i = jax.nn.sigmoid(gates[:, 0:H])
        f = jax.nn.sigmoid(gates[:, H:2 * H])
        g = jnp.tanh(gates[:, 2 * H:3 * H])
        o = jax.nn.sigmoid(gates[:, 3 * H:4 * H])
        c = f * c + i * g
        h = o * jnp.tanh(c)
        return (h, c), h

    (_, _), outs = lax.scan(cell,
                            (jnp.zeros((B, H)), jnp.zeros((B, H))),
                            jnp.transpose(x, (1, 0, 2)))
    summed = jnp.sum(outs, axis=0)                                # torch.sum(out, 1)
    return jax.nn.sigmoid(summed @ params["fc_w"].T + params["fc_b"])


if __name__ == "__main__":
    key = jax.random.PRNGKey(0)
    pkey, xkey1, xkey2 = jax.random.split(key, 3)
    params = init_params(pkey)

    # Small case (B=2, T=8): one batch tile, one T-chunk, single stream.
    x_small = jax.random.randint(xkey1, (2, 8), 0, VOCAB_SIZE, dtype=jnp.int32)
    out_small = jax.block_until_ready(text_rnn_attention_forward(x_small, params))
    ref_small = reference_forward(x_small, params)
    assert out_small.shape == (2, OUTPUT_SIZE)
    assert jnp.allclose(out_small, ref_small, atol=2e-2, rtol=2e-2), (out_small, ref_small)

    # Larger case (B=32, T=19): nb=2 "parallel" batch tiles, multi-chunk T axis
    # with ragged-tail masking, and the dual-stream interleave path.
    x_big = jax.random.randint(xkey2, (32, 19), 0, VOCAB_SIZE, dtype=jnp.int32)
    out_big = jax.block_until_ready(text_rnn_attention_forward(x_big, params))
    ref_big = reference_forward(x_big, params)
    assert out_big.shape == (32, OUTPUT_SIZE)
    assert jnp.allclose(out_big, ref_big, atol=2e-2, rtol=2e-2), (out_big, ref_big)

    print("KERNEL_OK")
</pallas_src>

<mosaic_0001>
module attributes {stable_mosaic.version = 11 : i64} {
  func.func @_text_rnn_kernel(%arg0: i32, %arg1: i32, %arg2: memref<1x8x8x512xbf16, #tpu.memory_space<vmem>>, %arg3: memref<128x512xbf16, #tpu.memory_space<vmem>>, %arg4: memref<1x512xf32, #tpu.memory_space<vmem>>, %arg5: memref<1x128xf32, #tpu.memory_space<vmem>>, %arg6: memref<1xf32, #tpu.memory_space<smem>>, %arg7: memref<8x1xf32, #tpu.memory_space<vmem>>, %arg8: memref<8x128xf32, #tpu.memory_space<vmem>>, %arg9: memref<8x128xf32, #tpu.memory_space<vmem>>, %arg10: memref<8x128xf32, #tpu.memory_space<vmem>>) attributes {dimension_semantics = [#tpu.dimension_semantics<parallel>, #tpu.dimension_semantics<arbitrary>], iteration_bounds = array<i64: 1, 1>, scalar_prefetch = 0 : i64, scratch_operands = 3 : i64, tpu.core_type = #tpu.core_type<tc>, window_params = [{transform_indices = @transform_0, window_bounds = array<i64: 1, 8, 8, 512>}, {pipeline_mode = #tpu.pipeline_mode<synchronous>, transform_indices = @transform_1, window_bounds = array<i64: 128, 512>}, {pipeline_mode = #tpu.pipeline_mode<synchronous>, transform_indices = @transform_2, window_bounds = array<i64: 1, 512>}, {pipeline_mode = #tpu.pipeline_mode<synchronous>, transform_indices = @transform_3, window_bounds = array<i64: 1, 128>}, {transform_indices = @transform_4, window_bounds = array<i64: 1>}, {transform_indices = @transform_5, window_bounds = array<i64: 8, 1>}]} {
    %c0_i32 = arith.constant 0 : i32
    %0 = arith.cmpi eq, %arg1, %c0_i32 : i32
    %1 = arith.extui %0 : i1 to i32
    %c0_i32_0 = arith.constant 0 : i32
    %2 = arith.cmpi ne, %1, %c0_i32_0 : i32
    scf.if %2 {
      %cst_122 = arith.constant 0.000000e+00 : f32
      %334 = vector.broadcast %cst_122 : f32 to vector<8x128xf32>
      %c0_123 = arith.constant 0 : index
      %c0_124 = arith.constant 0 : index
      %335 = vector.load %arg8[%c0_123, %c0_124] : memref<8x128xf32, #tpu.memory_space<vmem>>, vector<8x128xf32>
      tpu.vector_store %arg8[%c0_123, %c0_124], %334 {strides = array<i32>} : memref<8x128xf32, #tpu.memory_space<vmem>>, vector<8x128xf32>,
      %cst_125 = arith.constant 0.000000e+00 : f32
      %336 = vector.broadcast %cst_125 : f32 to vector<8x128xf32>
      %c0_126 = arith.constant 0 : index
      %c0_127 = arith.constant 0 : index
      %337 = vector.load %arg9[%c0_126, %c0_127] : memref<8x128xf32, #tpu.memory_space<vmem>>, vector<8x128xf32>
      tpu.vector_store %arg9[%c0_126, %c0_127], %336 {strides = array<i32>} : memref<8x128xf32, #tpu.memory_space<vmem>>, vector<8x128xf32>,
      %cst_128 = arith.constant 0.000000e+00 : f32
      %338 = vector.broadcast %cst_128 : f32 to vector<8x128xf32>
      %c0_129 = arith.constant 0 : index
      %c0_130 = arith.constant 0 : index
      %339 = vector.load %arg10[%c0_129, %c0_130] : memref<8x128xf32, #tpu.memory_space<vmem>>, vector<8x128xf32>
      tpu.vector_store %arg10[%c0_129, %c0_130], %338 {strides = array<i32>} : memref<8x128xf32, #tpu.memory_space<vmem>>, vector<8x128xf32>,
    } else {
    }
    %c0 = arith.constant 0 : index
    %c0_1 = arith.constant 0 : index
    %3 = vector.load %arg3[%c0, %c0_1] : memref<128x512xbf16, #tpu.memory_space<vmem>>, vector<128x512xbf16>
    %c0_2 = arith.constant 0 : index
    %c0_3 = arith.constant 0 : index
    %4 = vector.load %arg4[%c0_2, %c0_3] : memref<1x512xf32, #tpu.memory_space<vmem>>, vector<1x512xf32>
    %c0_4 = arith.constant 0 : index
    %c0_5 = arith.constant 0 : index
    %5 = vector.load %arg8[%c0_4, %c0_5] : memref<8x128xf32, #tpu.memory_space<vmem>>, vector<8x128xf32>
    %c0_6 = arith.constant 0 : index
    %c0_7 = arith.constant 0 : index
    %6 = vector.load %arg9[%c0_6, %c0_7] : memref<8x128xf32, #tpu.memory_space<vmem>>, vector<8x128xf32>
    %c0_8 = arith.constant 0 : index
    %c0_9 = arith.constant 0 : index
    %7 = vector.load %arg10[%c0_8, %c0_9] : memref<8x128xf32, #tpu.memory_space<vmem>>, vector<8x128xf32>
    %c0_10 = arith.constant 0 : index
    %c0_11 = arith.constant 0 : index
    %c0_12 = arith.constant 0 : index
    %c0_13 = arith.constant 0 : index
    %8 = vector.load %arg2[%c0_10, %c0_11, %c0_12, %c0_13] : memref<1x8x8x512xbf16, #tpu.memory_space<vmem>>, vector<1x1x8x512xbf16>
    %9 = vector.shape_cast %8 : vector<1x1x8x512xbf16> to vector<8x512xbf16>
    %10 = arith.extf %9 : vector<8x512xbf16> to vector<8x512xf32>
    %11 = vector.broadcast %4 : vector<1x512xf32> to vector<8x512xf32>
    %12 = arith.addf %10, %11 : vector<8x512xf32>
    %13 = arith.truncf %5 : vector<8x128xf32> to vector<8x128xbf16>
    %cst = arith.constant dense<0.000000e+00> : vector<8x512xf32>
    %14 = tpu.matmul %13, %3, %cst {dimension_numbers = #tpu.dot_dimension_numbers<[1], [0], [0], [1], [0, 0, 1, 1], [], []>} : vector<8x128xbf16>, vector<128x512xbf16>, vector<8x512xf32> -> vector<8x512xf32>
    %15 = arith.addf %12, %14 : vector<8x512xf32>
    %16 = vector.extract_strided_slice %15 {offsets = [0, 0], sizes = [8, 128], strides = [1, 1]} : vector<8x512xf32> to vector<8x128xf32>
    %cst_14 = arith.constant 5.000000e-01 : f32
    %17 = vector.broadcast %cst_14 : f32 to vector<8x128xf32>
    %18 = arith.mulf %17, %16 : vector<8x128xf32>
    %19 = math.tanh %18 : vector<8x128xf32>
    %cst_15 = arith.constant 1.000000e+00 : f32
    %20 = vector.broadcast %cst_15 : f32 to vector<8x128xf32>
    %21 = arith.addf %19, %20 : vector<8x128xf32>
    %cst_16 = arith.constant 5.000000e-01 : f32
    %22 = vector.broadcast %cst_16 : f32 to vector<8x128xf32>
    %23 = arith.mulf %22, %21 : vector<8x128xf32>
    %24 = vector.extract_strided_slice %15 {offsets = [0, 128], sizes = [8, 128], strides = [1, 1]} : vector<8x512xf32> to vector<8x128xf32>
    %cst_17 = arith.constant 5.000000e-01 : f32
    %25 = vector.broadcast %cst_17 : f32 to vector<8x128xf32>
    %26 = arith.mulf %25, %24 : vector<8x128xf32>
    %27 = math.tanh %26 : vector<8x128xf32>
    %cst_18 = arith.constant 1.000000e+00 : f32
    %28 = vector.broadcast %cst_18 : f32 to vector<8x128xf32>
    %29 = arith.addf %27, %28 : vector<8x128xf32>
    %cst_19 = arith.constant 5.000000e-01 : f32
    %30 = vector.broadcast %cst_19 : f32 to vector<8x128xf32>
    %31 = arith.mulf %30, %29 : vector<8x128xf32>
    %32 = vector.extract_strided_slice %15 {offsets = [0, 256], sizes = [8, 128], strides = [1, 1]} : vector<8x512xf32> to vector<8x128xf32>
    %33 = math.tanh %32 : vector<8x128xf32>
    %34 = vector.extract_strided_slice %15 {offsets = [0, 384], sizes = [8, 128], strides = [1, 1]} : vector<8x512xf32> to vector<8x128xf32>
    %cst_20 = arith.constant 5.000000e-01 : f32
    %35 = vector.broadcast %cst_20 : f32 to vector<8x128xf32>
    %36 = arith.mulf %35, %34 : vector<8x128xf32>
    %37 = math.tanh %36 : vector<8x128xf32>
    %cst_21 = arith.constant 1.000000e+00 : f32
    %38 = vector.broadcast %cst_21 : f32 to vector<8x128xf32>
    %39 = arith.addf %37, %38 : vector<8x128xf32>
    %cst_22 = arith.constant 5.000000e-01 : f32
    %40 = vector.broadcast %cst_22 : f32 to vector<8x128xf32>
    %41 = arith.mulf %40, %39 : vector<8x128xf32>
    %42 = arith.mulf %31, %6 : vector<8x128xf32>
    %43 = arith.mulf %23, %33 : vector<8x128xf32>
    %44 = arith.addf %42, %43 : vector<8x128xf32>
    %45 = math.tanh %44 : vector<8x128xf32>
    %46 = arith.mulf %41, %45 : vector<8x128xf32>
    %47 = arith.addf %7, %46 : vector<8x128xf32>
    %c0_23 = arith.constant 0 : index
    %c1 = arith.constant 1 : index
    %c0_24 = arith.constant 0 : index
    %c0_25 = arith.constant 0 : index
    %48 = vector.load %arg2[%c0_23, %c1, %c0_24, %c0_25] : memref<1x8x8x512xbf16, #tpu.memory_space<vmem>>, vector<1x1x8x512xbf16>
    %49 = vector.shape_cast %48 : vector<1x1x8x512xbf16> to vector<8x512xbf16>
    %50 = arith.extf %49 : vector<8x512xbf16> to vector<8x512xf32>
    %51 = vector.broadcast %4 : vector<1x512xf32> to vector<8x512xf32>
    %52 = arith.addf %50, %51 : vector<8x512xf32>
    %53 = arith.truncf %46 : vector<8x128xf32> to vector<8x128xbf16>
    %cst_26 = arith.constant dense<0.000000e+00> : vector<8x512xf32>
    %54 = tpu.matmul %53, %3, %cst_26 {dimension_numbers = #tpu.dot_dimension_numbers<[1], [0], [0], [1], [0, 0, 1, 1], [], []>} : vector<8x128xbf16>, vector<128x512xbf16>, vector<8x512xf32> -> vector<8x512xf32>
    %55 = arith.addf %52, %54 : vector<8x512xf32>
    %56 = vector.extract_strided_slice %55 {offsets = [0, 0], sizes = [8, 128], strides = [1, 1]} : vector<8x512xf32> to vector<8x128xf32>
    %cst_27 = arith.constant 5.000000e-01 : f32
    %57 = vector.broadcast %cst_27 : f32 to vector<8x128xf32>
    %58 = arith.mulf %57, %56 : vector<8x128xf32>
    %59 = math.tanh %58 : vector<8x128xf32>
    %cst_28 = arith.constant 1.000000e+00 : f32
    %60 = vector.broadcast %cst_28 : f32 to vector<8x128xf32>
    %61 = arith.addf %59, %60 : vector<8x128xf32>
    %cst_29 = arith.constant 5.000000e-01 : f32
    %62 = vector.broadcast %cst_29 : f32 to vector<8x128xf32>
    %63 = arith.mulf %62, %61 : vector<8x128xf32>
    %64 = vector.extract_strided_slice %55 {offsets = [0, 128], sizes = [8, 128], strides = [1, 1]} : vector<8x512xf32> to vector<8x128xf32>
    %cst_30 = arith.constant 5.000000e-01 : f32
    %65 = vector.broadcast %cst_30 : f32 to vector<8x128xf32>
    %66 = arith.mulf %65, %64 : vector<8x128xf32>
    %67 = math.tanh %66 : vector<8x128xf32>
    %cst_31 = arith.constant 1.000000e+00 : f32
    %68 = vector.broadcast %cst_31 : f32 to vector<8x128xf32>
    %69 = arith.addf %67, %68 : vector<8x128xf32>
    %cst_32 = arith.constant 5.000000e-01 : f32
    %70 = vector.broadcast %cst_32 : f32 to vector<8x128xf32>
    %71 = arith.mulf %70, %69 : vector<8x128xf32>
    %72 = vector.extract_strided_slice %55 {offsets = [0, 256], sizes = [8, 128], strides = [1, 1]} : vector<8x512xf32> to vector<8x128xf32>
    %73 = math.tanh %72 : vector<8x128xf32>
    %74 = vector.extract_strided_slice %55 {offsets = [0, 384], sizes = [8, 128], strides = [1, 1]} : vector<8x512xf32> to vector<8x128xf32>
    %cst_33 = arith.constant 5.000000e-01 : f32
    %75 = vector.broadcast %cst_33 : f32 to vector<8x128xf32>
    %76 = arith.mulf %75, %74 : vector<8x128xf32>
    %77 = math.tanh %76 : vector<8x128xf32>
    %cst_34 = arith.constant 1.000000e+00 : f32
    %78 = vector.broadcast %cst_34 : f32 to vector<8x128xf32>
    %79 = arith.addf %77, %78 : vector<8x128xf32>
    %cst_35 = arith.constant 5.000000e-01 : f32
    %80 = vector.broadcast %cst_35 : f32 to vector<8x128xf32>
    %81 = arith.mulf %80, %79 : vector<8x128xf32>
    %82 = arith.mulf %71, %44 : vector<8x128xf32>
    %83 = arith.mulf %63, %73 : vector<8x128xf32>
    %84 = arith.addf %82, %83 : vector<8x128xf32>
    %85 = math.tanh %84 : vector<8x128xf32>
    %86 = arith.mulf %81, %85 : vector<8x128xf32>
    %87 = arith.addf %47, %86 : vector<8x128xf32>
    %c0_36 = arith.constant 0 : index
    %c2 = arith.constant 2 : index
    %c0_37 = arith.constant 0 : index
    %c0_38 = arith.constant 0 : index
    %88 = vector.load %arg2[%c0_36, %c2, %c0_37, %c0_38] : memref<1x8x8x512xbf16, #tpu.memory_space<vmem>>, vector<1x1x8x512xbf16>
    %89 = vector.shape_cast %88 : vector<1x1x8x512xbf16> to vector<8x512xbf16>
    %90 = arith.extf %89 : vector<8x512xbf16> to vector<8x512xf32>
    %91 = vector.broadcast %4 : vector<1x512xf32> to vector<8x512xf32>
    %92 = arith.addf %90, %91 : vector<8x512xf32>
    %93 = arith.truncf %86 : vector<8x128xf32> to vector<8x128xbf16>
    %cst_39 = arith.constant dense<0.000000e+00> : vector<8x512xf32>
    %94 = tpu.matmul %93, %3, %cst_39 {dimension_numbers = #tpu.dot_dimension_numbers<[1], [0], [0], [1], [0, 0, 1, 1], [], []>} : vector<8x128xbf16>, vector<128x512xbf16>, vector<8x512xf32> -> vector<8x512xf32>
    %95 = arith.addf %92, %94 : vector<8x512xf32>
    %96 = vector.extract_strided_slice %95 {offsets = [0, 0], sizes = [8, 128], strides = [1, 1]} : vector<8x512xf32> to vector<8x128xf32>
    %cst_40 = arith.constant 5.000000e-01 : f32
    %97 = vector.broadcast %cst_40 : f32 to vector<8x128xf32>
    %98 = arith.mulf %97, %96 : vector<8x128xf32>
    %99 = math.tanh %98 : vector<8x128xf32>
    %cst_41 = arith.constant 1.000000e+00 : f32
    %100 = vector.broadcast %cst_41 : f32 to vector<8x128xf32>
    %101 = arith.addf %99, %100 : vector<8x128xf32>
    %cst_42 = arith.constant 5.000000e-01 : f32
    %102 = vector.broadcast %cst_42 : f32 to vector<8x128xf32>
    %103 = arith.mulf %102, %101 : vector<8x128xf32>
    %104 = vector.extract_strided_slice %95 {offsets = [0, 128], sizes = [8, 128], strides = [1, 1]} : vector<8x512xf32> to vector<8x128xf32>
    %cst_43 = arith.constant 5.000000e-01 : f32
    %105 = vector.broadcast %cst_43 : f32 to vector<8x128xf32>
    %106 = arith.mulf %105, %104 : vector<8x128xf32>
    %107 = math.tanh %106 : vector<8x128xf32>
    %cst_44 = arith.constant 1.000000e+00 : f32
    %108 = vector.broadcast %cst_44 : f32 to vector<8x128xf32>
    %109 = arith.addf %107, %108 : vector<8x128xf32>
    %cst_45 = arith.constant 5.000000e-01 : f32
    %110 = vector.broadcast %cst_45 : f32 to vector<8x128xf32>
    %111 = arith.mulf %110, %109 : vector<8x128xf32>
    %112 = vector.extract_strided_slice %95 {offsets = [0, 256], sizes = [8, 128], strides = [1, 1]} : vector<8x512xf32> to vector<8x128xf32>
    %113 = math.tanh %112 : vector<8x128xf32>
    %114 = vector.extract_strided_slice %95 {offsets = [0, 384], sizes = [8, 128], strides = [1, 1]} : vector<8x512xf32> to vector<8x128xf32>
    %cst_46 = arith.constant 5.000000e-01 : f32
    %115 = vector.broadcast %cst_46 : f32 to vector<8x128xf32>
    %116 = arith.mulf %115, %114 : vector<8x128xf32>
    %117 = math.tanh %116 : vector<8x128xf32>
    %cst_47 = arith.constant 1.000000e+00 : f32
    %118 = vector.broadcast %cst_47 : f32 to vector<8x128xf32>
    %119 = arith.addf %117, %118 : vector<8x128xf32>
    %cst_48 = arith.constant 5.000000e-01 : f32
    %120 = vector.broadcast %cst_48 : f32 to vector<8x128xf32>
    %121 = arith.mulf %120, %119 : vector<8x128xf32>
    %122 = arith.mulf %111, %84 : vector<8x128xf32>
    %123 = arith.mulf %103, %113 : vector<8x128xf32>
    %124 = arith.addf %122, %123 : vector<8x128xf32>
    %125 = math.tanh %124 : vector<8x128xf32>
    %126 = arith.mulf %121, %125 : vector<8x128xf32>
    %127 = arith.addf %87, %126 : vector<8x128xf32>
    %c0_49 = arith.constant 0 : index
    %c3 = arith.constant 3 : index
    %c0_50 = arith.constant 0 : index
    %c0_51 = arith.constant 0 : index
    %128 = vector.load %arg2[%c0_49, %c3, %c0_50, %c0_51] : memref<1x8x8x512xbf16, #tpu.memory_space<vmem>>, vector<1x1x8x512xbf16>
    %129 = vector.shape_cast %128 : vector<1x1x8x512xbf16> to vector<8x512xbf16>
    %130 = arith.extf %129 : vector<8x512xbf16> to vector<8x512xf32>
    %131 = vector.broadcast %4 : vector<1x512xf32> to vector<8x512xf32>
    %132 = arith.addf %130, %131 : vector<8x512xf32>
    %133 = arith.truncf %126 : vector<8x128xf32> to vector<8x128xbf16>
    %cst_52 = arith.constant dense<0.000000e+00> : vector<8x512xf32>
    %134 = tpu.matmul %133, %3, %cst_52 {dimension_numbers = #tpu.dot_dimension_numbers<[1], [0], [0], [1], [0, 0, 1, 1], [], []>} : vector<8x128xbf16>, vector<128x512xbf16>, vector<8x512xf32> -> vector<8x512xf32>
    %135 = arith.addf %132, %134 : vector<8x512xf32>
    %136 = vector.extract_strided_slice %135 {offsets = [0, 0], sizes = [8, 128], strides = [1, 1]} : vector<8x512xf32> to vector<8x128xf32>
    %cst_53 = arith.constant 5.000000e-01 : f32
    %137 = vector.broadcast %cst_53 : f32 to vector<8x128xf32>
    %138 = arith.mulf %137, %136 : vector<8x128xf32>
    %139 = math.tanh %138 : vector<8x128xf32>
    %cst_54 = arith.constant 1.000000e+00 : f32
    %140 = vector.broadcast %cst_54 : f32 to vector<8x128xf32>
    %141 = arith.addf %139, %140 : vector<8x128xf32>
    %cst_55 = arith.constant 5.000000e-01 : f32
    %142 = vector.broadcast %cst_55 : f32 to vector<8x128xf32>
    %143 = arith.mulf %142, %141 : vector<8x128xf32>
    %144 = vector.extract_strided_slice %135 {offsets = [0, 128], sizes = [8, 128], strides = [1, 1]} : vector<8x512xf32> to vector<8x128xf32>
    %cst_56 = arith.constant 5.000000e-01 : f32
    %145 = vector.broadcast %cst_56 : f32 to vector<8x128xf32>
    %146 = arith.mulf %145, %144 : vector<8x128xf32>
    %147 = math.tanh %146 : vector<8x128xf32>
    %cst_57 = arith.constant 1.000000e+00 : f32
    %148 = vector.broadcast %cst_57 : f32 to vector<8x128xf32>
    %149 = arith.addf %147, %148 : vector<8x128xf32>
    %cst_58 = arith.constant 5.000000e-01 : f32
    %150 = vector.broadcast %cst_58 : f32 to vector<8x128xf32>
    %151 = arith.mulf %150, %149 : vector<8x128xf32>
    %152 = vector.extract_strided_slice %135 {offsets = [0, 256], sizes = [8, 128], strides = [1, 1]} : vector<8x512xf32> to vector<8x128xf32>
    %153 = math.tanh %152 : vector<8x128xf32>
    %154 = vector.extract_strided_slice %135 {offsets = [0, 384], sizes = [8, 128], strides = [1, 1]} : vector<8x512xf32> to vector<8x128xf32>
    %cst_59 = arith.constant 5.000000e-01 : f32
    %155 = vector.broadcast %cst_59 : f32 to vector<8x128xf32>
    %156 = arith.mulf %155, %154 : vector<8x128xf32>
    %157 = math.tanh %156 : vector<8x128xf32>
    %cst_60 = arith.constant 1.000000e+00 : f32
    %158 = vector.broadcast %cst_60 : f32 to vector<8x128xf32>
    %159 = arith.addf %157, %158 : vector<8x128xf32>
    %cst_61 = arith.constant 5.000000e-01 : f32
    %160 = vector.broadcast %cst_61 : f32 to vector<8x128xf32>
    %161 = arith.mulf %160, %159 : vector<8x128xf32>
    %162 = arith.mulf %151, %124 : vector<8x128xf32>
    %163 = arith.mulf %143, %153 : vector<8x128xf32>
    %164 = arith.addf %162, %163 : vector<8x128xf32>
    %165 = math.tanh %164 : vector<8x128xf32>
    %166 = arith.mulf %161, %165 : vector<8x128xf32>
    %167 = arith.addf %127, %166 : vector<8x128xf32>
    %c0_62 = arith.constant 0 : index
    %c4 = arith.constant 4 : index
    %c0_63 = arith.constant 0 : index
    %c0_64 = arith.constant 0 : index
    %168 = vector.load %arg2[%c0_62, %c4, %c0_63, %c0_64] : memref<1x8x8x512xbf16, #tpu.memory_space<vmem>>, vector<1x1x8x512xbf16>
    %169 = vector.shape_cast %168 : vector<1x1x8x512xbf16> to vector<8x512xbf16>
    %170 = arith.extf %169 : vector<8x512xbf16> to vector<8x512xf32>
    %171 = vector.broadcast %4 : vector<1x512xf32> to vector<8x512xf32>
    %172 = arith.addf %170, %171 : vector<8x512xf32>
    %173 = arith.truncf %166 : vector<8x128xf32> to vector<8x128xbf16>
    %cst_65 = arith.constant dense<0.000000e+00> : vector<8x512xf32>
    %174 = tpu.matmul %173, %3, %cst_65 {dimension_numbers = #tpu.dot_dimension_numbers<[1], [0], [0], [1], [0, 0, 1, 1], [], []>} : vector<8x128xbf16>, vector<128x512xbf16>, vector<8x512xf32> -> vector<8x512xf32>
    %175 = arith.addf %172, %174 : vector<8x512xf32>
    %176 = vector.extract_strided_slice %175 {offsets = [0, 0], sizes = [8, 128], strides = [1, 1]} : vector<8x512xf32> to vector<8x128xf32>
    %cst_66 = arith.constant 5.000000e-01 : f32
    %177 = vector.broadcast %cst_66 : f32 to vector<8x128xf32>
    %178 = arith.mulf %177, %176 : vector<8x128xf32>
    %179 = math.tanh %178 : vector<8x128xf32>
    %cst_67 = arith.constant 1.000000e+00 : f32
    %180 = vector.broadcast %cst_67 : f32 to vector<8x128xf32>
    %181 = arith.addf %179, %180 : vector<8x128xf32>
    %cst_68 = arith.constant 5.000000e-01 : f32
    %182 = vector.broadcast %cst_68 : f32 to vector<8x128xf32>
    %183 = arith.mulf %182, %181 : vector<8x128xf32>
    %184 = vector.extract_strided_slice %175 {offsets = [0, 128], sizes = [8, 128], strides = [1, 1]} : vector<8x512xf32> to vector<8x128xf32>
    %cst_69 = arith.constant 5.000000e-01 : f32
    %185 = vector.broadcast %cst_69 : f32 to vector<8x128xf32>
    %186 = arith.mulf %185, %184 : vector<8x128xf32>
    %187 = math.tanh %186 : vector<8x128xf32>
    %cst_70 = arith.constant 1.000000e+00 : f32
    %188 = vector.broadcast %cst_70 : f32 to vector<8x128xf32>
    %189 = arith.addf %187, %188 : vector<8x128xf32>
    %cst_71 = arith.constant 5.000000e-01 : f32
    %190 = vector.broadcast %cst_71 : f32 to vector<8x128xf32>
    %191 = arith.mulf %190, %189 : vector<8x128xf32>
    %192 = vector.extract_strided_slice %175 {offsets = [0, 256], sizes = [8, 128], strides = [1, 1]} : vector<8x512xf32> to vector<8x128xf32>
    %193 = math.tanh %192 : vector<8x128xf32>
    %194 = vector.extract_strided_slice %175 {offsets = [0, 384], sizes = [8, 128], strides = [1, 1]} : vector<8x512xf32> to vector<8x128xf32>
    %cst_72 = arith.constant 5.000000e-01 : f32
    %195 = vector.broadcast %cst_72 : f32 to vector<8x128xf32>
    %196 = arith.mulf %195, %194 : vector<8x128xf32>
    %197 = math.tanh %196 : vector<8x128xf32>
    %cst_73 = arith.constant 1.000000e+00 : f32
    %198 = vector.broadcast %cst_73 : f32 to vector<8x128xf32>
    %199 = arith.addf %197, %198 : vector<8x128xf32>
    %cst_74 = arith.constant 5.000000e-01 : f32
    %200 = vector.broadcast %cst_74 : f32 to vector<8x128xf32>
    %201 = arith.mulf %200, %199 : vector<8x128xf32>
    %202 = arith.mulf %191, %164 : vector<8x128xf32>
    %203 = arith.mulf %183, %193 : vector<8x128xf32>
    %204 = arith.addf %202, %203 : vector<8x128xf32>
    %205 = math.tanh %204 : vector<8x128xf32>
    %206 = arith.mulf %201, %205 : vector<8x128xf32>
    %207 = arith.addf %167, %206 : vector<8x128xf32>
    %c0_75 = arith.constant 0 : index
    %c5 = arith.constant 5 : index
    %c0_76 = arith.constant 0 : index
    %c0_77 = arith.constant 0 : index
    %208 = vector.load %arg2[%c0_75, %c5, %c0_76, %c0_77] : memref<1x8x8x512xbf16, #tpu.memory_space<vmem>>, vector<1x1x8x512xbf16>
    %209 = vector.shape_cast %208 : vector<1x1x8x512xbf16> to vector<8x512xbf16>
    %210 = arith.extf %209 : vector<8x512xbf16> to vector<8x512xf32>
    %211 = vector.broadcast %4 : vector<1x512xf32> to vector<8x512xf32>
    %212 = arith.addf %210, %211 : vector<8x512xf32>
    %213 = arith.truncf %206 : vector<8x128xf32> to vector<8x128xbf16>
    %cst_78 = arith.constant dense<0.000000e+00> : vector<8x512xf32>
    %214 = tpu.matmul %213, %3, %cst_78 {dimension_numbers = #tpu.dot_dimension_numbers<[1], [0], [0], [1], [0, 0, 1, 1], [], []>} : vector<8x128xbf16>, vector<128x512xbf16>, vector<8x512xf32> -> vector<8x512xf32>
    %215 = arith.addf %212, %214 : vector<8x512xf32>
    %216 = vector.extract_strided_slice %215 {offsets = [0, 0], sizes = [8, 128], strides = [1, 1]} : vector<8x512xf32> to vector<8x128xf32>
    %cst_79 = arith.constant 5.000000e-01 : f32
    %217 = vector.broadcast %cst_79 : f32 to vector<8x128xf32>
    %218 = arith.mulf %217, %216 : vector<8x128xf32>
    %219 = math.tanh %218 : vector<8x128xf32>
    %cst_80 = arith.constant 1.000000e+00 : f32
    %220 = vector.broadcast %cst_80 : f32 to vector<8x128xf32>
    %221 = arith.addf %219, %220 : vector<8x128xf32>
    %cst_81 = arith.constant 5.000000e-01 : f32
    %222 = vector.broadcast %cst_81 : f32 to vector<8x128xf32>
    %223 = arith.mulf %222, %221 : vector<8x128xf32>
    %224 = vector.extract_strided_slice %215 {offsets = [0, 128], sizes = [8, 128], strides = [1, 1]} : vector<8x512xf32> to vector<8x128xf32>
    %cst_82 = arith.constant 5.000000e-01 : f32
    %225 = vector.broadcast %cst_82 : f32 to vector<8x128xf32>
    %226 = arith.mulf %225, %224 : vector<8x128xf32>
    %227 = math.tanh %226 : vector<8x128xf32>
    %cst_83 = arith.constant 1.000000e+00 : f32
    %228 = vector.broadcast %cst_83 : f32 to vector<8x128xf32>
    %229 = arith.addf %227, %228 : vector<8x128xf32>
    %cst_84 = arith.constant 5.000000e-01 : f32
    %230 = vector.broadcast %cst_84 : f32 to vector<8x128xf32>
    %231 = arith.mulf %230, %229 : vector<8x128xf32>
    %232 = vector.extract_strided_slice %215 {offsets = [0, 256], sizes = [8, 128], strides = [1, 1]} : vector<8x512xf32> to vector<8x128xf32>
    %233 = math.tanh %232 : vector<8x128xf32>
    %234 = vector.extract_strided_slice %215 {offsets = [0, 384], sizes = [8, 128], strides = [1, 1]} : vector<8x512xf32> to vector<8x128xf32>
    %cst_85 = arith.constant 5.000000e-01 : f32
    %235 = vector.broadcast %cst_85 : f32 to vector<8x128xf32>
    %236 = arith.mulf %235, %234 : vector<8x128xf32>
    %237 = math.tanh %236 : vector<8x128xf32>
    %cst_86 = arith.constant 1.000000e+00 : f32
    %238 = vector.broadcast %cst_86 : f32 to vector<8x128xf32>
    %239 = arith.addf %237, %238 : vector<8x128xf32>
    %cst_87 = arith.constant 5.000000e-01 : f32
    %240 = vector.broadcast %cst_87 : f32 to vector<8x128xf32>
    %241 = arith.mulf %240, %239 : vector<8x128xf32>
    %242 = arith.mulf %231, %204 : vector<8x128xf32>
    %243 = arith.mulf %223, %233 : vector<8x128xf32>
    %244 = arith.addf %242, %243 : vector<8x128xf32>
    %245 = math.tanh %244 : vector<8x128xf32>
    %246 = arith.mulf %241, %245 : vector<8x128xf32>
    %247 = arith.addf %207, %246 : vector<8x128xf32>
    %c0_88 = arith.constant 0 : index
    %c6 = arith.constant 6 : index
    %c0_89 = arith.constant 0 : index
    %c0_90 = arith.constant 0 : index
    %248 = vector.load %arg2[%c0_88, %c6, %c0_89, %c0_90] : memref<1x8x8x512xbf16, #tpu.memory_space<vmem>>, vector<1x1x8x512xbf16>
    %249 = vector.shape_cast %248 : vector<1x1x8x512xbf16> to vector<8x512xbf16>
    %250 = arith.extf %249 : vector<8x512xbf16> to vector<8x512xf32>
    %251 = vector.broadcast %4 : vector<1x512xf32> to vector<8x512xf32>
    %252 = arith.addf %250, %251 : vector<8x512xf32>
    %253 = arith.truncf %246 : vector<8x128xf32> to vector<8x128xbf16>
    %cst_91 = arith.constant dense<0.000000e+00> : vector<8x512xf32>
    %254 = tpu.matmul %253, %3, %cst_91 {dimension_numbers = #tpu.dot_dimension_numbers<[1], [0], [0], [1], [0, 0, 1, 1], [], []>} : vector<8x128xbf16>, vector<128x512xbf16>, vector<8x512xf32> -> vector<8x512xf32>
    %255 = arith.addf %252, %254 : vector<8x512xf32>
    %256 = vector.extract_strided_slice %255 {offsets = [0, 0], sizes = [8, 128], strides = [1, 1]} : vector<8x512xf32> to vector<8x128xf32>
    %cst_92 = arith.constant 5.000000e-01 : f32
    %257 = vector.broadcast %cst_92 : f32 to vector<8x128xf32>
    %258 = arith.mulf %257, %256 : vector<8x128xf32>
    %259 = math.tanh %258 : vector<8x128xf32>
    %cst_93 = arith.constant 1.000000e+00 : f32
    %260 = vector.broadcast %cst_93 : f32 to vector<8x128xf32>
    %261 = arith.addf %259, %260 : vector<8x128xf32>
    %cst_94 = arith.constant 5.000000e-01 : f32
    %262 = vector.broadcast %cst_94 : f32 to vector<8x128xf32>
    %263 = arith.mulf %262, %261 : vector<8x128xf32>
    %264 = vector.extract_strided_slice %255 {offsets = [0, 128], sizes = [8, 128], strides = [1, 1]} : vector<8x512xf32> to vector<8x128xf32>
    %cst_95 = arith.constant 5.000000e-01 : f32
    %265 = vector.broadcast %cst_95 : f32 to vector<8x128xf32>
    %266 = arith.mulf %265, %264 : vector<8x128xf32>
    %267 = math.tanh %266 : vector<8x128xf32>
    %cst_96 = arith.constant 1.000000e+00 : f32
    %268 = vector.broadcast %cst_96 : f32 to vector<8x128xf32>
    %269 = arith.addf %267, %268 : vector<8x128xf32>
    %cst_97 = arith.constant 5.000000e-01 : f32
    %270 = vector.broadcast %cst_97 : f32 to vector<8x128xf32>
    %271 = arith.mulf %270, %269 : vector<8x128xf32>
    %272 = vector.extract_strided_slice %255 {offsets = [0, 256], sizes = [8, 128], strides = [1, 1]} : vector<8x512xf32> to vector<8x128xf32>
    %273 = math.tanh %272 : vector<8x128xf32>
    %274 = vector.extract_strided_slice %255 {offsets = [0, 384], sizes = [8, 128], strides = [1, 1]} : vector<8x512xf32> to vector<8x128xf32>
    %cst_98 = arith.constant 5.000000e-01 : f32
    %275 = vector.broadcast %cst_98 : f32 to vector<8x128xf32>
    %276 = arith.mulf %275, %274 : vector<8x128xf32>
    %277 = math.tanh %276 : vector<8x128xf32>
    %cst_99 = arith.constant 1.000000e+00 : f32
    %278 = vector.broadcast %cst_99 : f32 to vector<8x128xf32>
    %279 = arith.addf %277, %278 : vector<8x128xf32>
    %cst_100 = arith.constant 5.000000e-01 : f32
    %280 = vector.broadcast %cst_100 : f32 to vector<8x128xf32>
    %281 = arith.mulf %280, %279 : vector<8x128xf32>
    %282 = arith.mulf %271, %244 : vector<8x128xf32>
    %283 = arith.mulf %263, %273 : vector<8x128xf32>
    %284 = arith.addf %282, %283 : vector<8x128xf32>
    %285 = math.tanh %284 : vector<8x128xf32>
    %286 = arith.mulf %281, %285 : vector<8x128xf32>
    %287 = arith.addf %247, %286 : vector<8x128xf32>
    %c0_101 = arith.constant 0 : index
    %c7 = arith.constant 7 : index
    %c0_102 = arith.constant 0 : index
    %c0_103 = arith.constant 0 : index
    %288 = vector.load %arg2[%c0_101, %c7, %c0_102, %c0_103] : memref<1x8x8x512xbf16, #tpu.memory_space<vmem>>, vector<1x1x8x512xbf16>
    %289 = vector.shape_cast %288 : vector<1x1x8x512xbf16> to vector<8x512xbf16>
    %290 = arith.extf %289 : vector<8x512xbf16> to vector<8x512xf32>
    %291 = vector.broadcast %4 : vector<1x512xf32> to vector<8x512xf32>
    %292 = arith.addf %290, %291 : vector<8x512xf32>
    %293 = arith.truncf %286 : vector<8x128xf32> to vector<8x128xbf16>
    %cst_104 = arith.constant dense<0.000000e+00> : vector<8x512xf32>
    %294 = tpu.matmul %293, %3, %cst_104 {dimension_numbers = #tpu.dot_dimension_numbers<[1], [0], [0], [1], [0, 0, 1, 1], [], []>} : vector<8x128xbf16>, vector<128x512xbf16>, vector<8x512xf32> -> vector<8x512xf32>
    %295 = arith.addf %292, %294 : vector<8x512xf32>
    %296 = vector.extract_strided_slice %295 {offsets = [0, 0], sizes = [8, 128], strides = [1, 1]} : vector<8x512xf32> to vector<8x128xf32>
    %cst_105 = arith.constant 5.000000e-01 : f32
    %297 = vector.broadcast %cst_105 : f32 to vector<8x128xf32>
    %298 = arith.mulf %297, %296 : vector<8x128xf32>
    %299 = math.tanh %298 : vector<8x128xf32>
    %cst_106 = arith.constant 1.000000e+00 : f32
    %300 = vector.broadcast %cst_106 : f32 to vector<8x128xf32>
    %301 = arith.addf %299, %300 : vector<8x128xf32>
    %cst_107 = arith.constant 5.000000e-01 : f32
    %302 = vector.broadcast %cst_107 : f32 to vector<8x128xf32>
    %303 = arith.mulf %302, %301 : vector<8x128xf32>
    %304 = vector.extract_strided_slice %295 {offsets = [0, 128], sizes = [8, 128], strides = [1, 1]} : vector<8x512xf32> to vector<8x128xf32>
    %cst_108 = arith.constant 5.000000e-01 : f32
    %305 = vector.broadcast %cst_108 : f32 to vector<8x128xf32>
    %306 = arith.mulf %305, %304 : vector<8x128xf32>
    %307 = math.tanh %306 : vector<8x128xf32>
    %cst_109 = arith.constant 1.000000e+00 : f32
    %308 = vector.broadcast %cst_109 : f32 to vector<8x128xf32>
    %309 = arith.addf %307, %308 : vector<8x128xf32>
    %cst_110 = arith.constant 5.000000e-01 : f32
    %310 = vector.broadcast %cst_110 : f32 to vector<8x128xf32>
    %311 = arith.mulf %310, %309 : vector<8x128xf32>
    %312 = vector.extract_strided_slice %295 {offsets = [0, 256], sizes = [8, 128], strides = [1, 1]} : vector<8x512xf32> to vector<8x128xf32>
    %313 = math.tanh %312 : vector<8x128xf32>
    %314 = vector.extract_strided_slice %295 {offsets = [0, 384], sizes = [8, 128], strides = [1, 1]} : vector<8x512xf32> to vector<8x128xf32>
    %cst_111 = arith.constant 5.000000e-01 : f32
    %315 = vector.broadcast %cst_111 : f32 to vector<8x128xf32>
    %316 = arith.mulf %315, %314 : vector<8x128xf32>
    %317 = math.tanh %316 : vector<8x128xf32>
    %cst_112 = arith.constant 1.000000e+00 : f32
    %318 = vector.broadcast %cst_112 : f32 to vector<8x128xf32>
    %319 = arith.addf %317, %318 : vector<8x128xf32>
    %cst_113 = arith.constant 5.000000e-01 : f32
    %320 = vector.broadcast %cst_113 : f32 to vector<8x128xf32>
    %321 = arith.mulf %320, %319 : vector<8x128xf32>
    %322 = arith.mulf %311, %284 : vector<8x128xf32>
    %323 = arith.mulf %303, %313 : vector<8x128xf32>
    %324 = arith.addf %322, %323 : vector<8x128xf32>
    %325 = math.tanh %324 : vector<8x128xf32>
    %326 = arith.mulf %321, %325 : vector<8x128xf32>
    %327 = arith.addf %287, %326 : vector<8x128xf32>
    %c0_114 = arith.constant 0 : index
    %c0_115 = arith.constant 0 : index
    %328 = vector.load %arg8[%c0_114, %c0_115] : memref<8x128xf32, #tpu.memory_space<vmem>>, vector<8x128xf32>
    tpu.vector_store %arg8[%c0_114, %c0_115], %326 {strides = array<i32>} : memref<8x128xf32, #tpu.memory_space<vmem>>, vector<8x128xf32>,
    %c0_116 = arith.constant 0 : index
    %c0_117 = arith.constant 0 : index
    %329 = vector.load %arg9[%c0_116, %c0_117] : memref<8x128xf32, #tpu.memory_space<vmem>>, vector<8x128xf32>
    tpu.vector_store %arg9[%c0_116, %c0_117], %324 {strides = array<i32>} : memref<8x128xf32, #tpu.memory_space<vmem>>, vector<8x128xf32>,
    %c0_118 = arith.constant 0 : index
    %c0_119 = arith.constant 0 : index
    %330 = vector.load %arg10[%c0_118, %c0_119] : memref<8x128xf32, #tpu.memory_space<vmem>>, vector<8x128xf32>
    tpu.vector_store %arg10[%c0_118, %c0_119], %327 {strides = array<i32>} : memref<8x128xf32, #tpu.memory_space<vmem>>, vector<8x128xf32>,
    %c0_i32_120 = arith.constant 0 : i32
    %331 = arith.cmpi eq, %arg1, %c0_i32_120 : i32
    %332 = arith.extui %331 : i1 to i32
    %c0_i32_121 = arith.constant 0 : i32
    %333 = arith.cmpi ne, %332, %c0_i32_121 : i32
    scf.if %333 {
      %c0_122 = arith.constant 0 : index
      %c0_123 = arith.constant 0 : index
      %334 = vector.load %arg10[%c0_122, %c0_123] : memref<8x128xf32, #tpu.memory_space<vmem>>, vector<8x128xf32>
      %c0_124 = arith.constant 0 : index
      %c0_125 = arith.constant 0 : index
      %335 = vector.load %arg5[%c0_124, %c0_125] : memref<1x128xf32, #tpu.memory_space<vmem>>, vector<1x128xf32>
      %336 = vector.broadcast %335 : vector<1x128xf32> to vector<8x128xf32>
      %337 = arith.mulf %334, %336 : vector<8x128xf32>
      %cst_126 = arith.constant dense<0.000000e+00> : vector<8xf32>
      %338 = vector.multi_reduction <add>, %337, %cst_126 [1] : vector<8x128xf32> to vector<8xf32>
      %339 = vector.shape_cast %338 : vector<8xf32> to vector<8x1xf32>
      %c0_127 = arith.constant 0 : index
      %340 = memref.load %arg6[%c0_127] : memref<1xf32, #tpu.memory_space<smem>>
      %341 = vector.broadcast %340 : f32 to vector<8x1xf32>
      %342 = arith.addf %339, %341 : vector<8x1xf32>
      %cst_128 = arith.constant 5.000000e-01 : f32
      %343 = vector.broadcast %cst_128 : f32 to vector<8x1xf32>
      %344 = arith.mulf %343, %342 : vector<8x1xf32>
      %345 = math.tanh %344 : vector<8x1xf32>
      %cst_129 = arith.constant 1.000000e+00 : f32
      %346 = vector.broadcast %cst_129 : f32 to vector<8x1xf32>
      %347 = arith.addf %345, %346 : vector<8x1xf32>
      %cst_130 = arith.constant 5.000000e-01 : f32
      %348 = vector.broadcast %cst_130 : f32 to vector<8x1xf32>
      %349 = arith.mulf %348, %347 : vector<8x1xf32>
      %c0_131 = arith.constant 0 : index
      %c0_132 = arith.constant 0 : index
      %350 = vector.load %arg7[%c0_131, %c0_132] : memref<8x1xf32, #tpu.memory_space<vmem>>, vector<8x1xf32>
      tpu.vector_store %arg7[%c0_131, %c0_132], %349 {strides = array<i32>} : memref<8x1xf32, #tpu.memory_space<vmem>>, vector<8x1xf32>,
    } else {
    }
    return
  }
  func.func @transform_0(%arg0: i32, %arg1: i32) -> (i32, i32, i32, i32) {
    %c0_i32 = arith.constant 0 : i32
    %c0_i32_0 = arith.constant 0 : i32
    %c0_i32_1 = arith.constant 0 : i32
    return %arg0, %arg1, %c0_i32, %c0_i32_0 : i32, i32, i32, i32
  }
  func.func @transform_1(%arg0: i32, %arg1: i32) -> (i32, i32) {
    %c0_i32 = arith.constant 0 : i32
    %c0_i32_0 = arith.constant 0 : i32
    %c0_i32_1 = arith.constant 0 : i32
    return %c0_i32, %c0_i32_0 : i32, i32
  }
  func.func @transform_2(%arg0: i32, %arg1: i32) -> (i32, i32) {
    %c0_i32 = arith.constant 0 : i32
    %c0_i32_0 = arith.constant 0 : i32
    %c0_i32_1 = arith.constant 0 : i32
    return %c0_i32, %c0_i32_0 : i32, i32
  }
  func.func @transform_3(%arg0: i32, %arg1: i32) -> (i32, i32) {
    %c0_i32 = arith.constant 0 : i32
    %c0_i32_0 = arith.constant 0 : i32
    %c0_i32_1 = arith.constant 0 : i32
    return %c0_i32, %c0_i32_0 : i32, i32
  }
  func.func @transform_4(%arg0: i32, %arg1: i32) -> i32 {
    %c0_i32 = arith.constant 0 : i32
    %c0_i32_0 = arith.constant 0 : i32
    return %c0_i32 : i32
  }
  func.func @transform_5(%arg0: i32, %arg1: i32) -> (i32, i32) {
    %c0_i32 = arith.constant 0 : i32
    %c0_i32_0 = arith.constant 0 : i32
    return %arg0, %c0_i32 : i32, i32
  }
}

</mosaic_0001>

<llo_original>
// kernel: text_rnn_attention_forward.1
$region0: #{text_rnn_attention_forward.1}
  #allocation0 [shape = 'u32[]', space=smem, size = 0x4, offset = 0x4, fixed_abs, tag = 'smem constant byte address 0x4 - core index']
  #allocation1 [shape = 'u32[144,128]{1,0:T(1,128)}', space=vmem, size = 0x12000, scoped, tag = 'internal scratch']
  #allocation2 [shape = 'f32[8,128]{1,0:T(8,128)}', space=vmem, size = 0x1000, scoped, tag = 'scratch operand']
  #allocation3 [shape = 'f32[8,128]{1,0:T(8,128)}', space=vmem, size = 0x1000, scoped, tag = 'scratch operand']
  #allocation4 [shape = 'f32[8,128]{1,0:T(8,128)}', space=vmem, size = 0x1000, scoped, tag = 'scratch operand']
  #allocation5 [shape = 'f32[1]{0:T(128)S(6)}', space=smem, size = 0x200, scoped, tag = 'scoped memory for text_rnn_attention_forward.1']
  %s0 = inlined_call_operand.vmem [shape: bf16[1,8,8,512], index: 0, kind: input, shape index: {}]
  %s1 = inlined_call_operand.vmem [shape: bf16[128,512], index: 1, kind: input, shape index: {}]
  %s2 = inlined_call_operand.vmem [shape: f32[1,512], index: 2, kind: input, shape index: {}]
  %s3 = inlined_call_operand.vmem [shape: f32[1,128], index: 3, kind: input, shape index: {}]
  %s4 = inlined_call_operand.<no memory space> [shape: f32[1], index: 4, kind: input, shape index: {}]
  %s5 = inlined_call_operand.vmem [shape: f32[8,1], index: 5, kind: output, shape index: {}]
  %s6 = sld [smem:[#allocation0]]
  $region38: #{text_rnn_attention_forward.1} parent=0
    _
  %s8 = ssub.s32 1, %s6
  %s9 = scalar_select 0, %s8, %s6
  %10 = sst [smem:[#allocation5]] %s4
  // Predicated region
  $region2: #{text_rnn_attention_forward.1} parent=0 // pred_check
    _
  $region3: #{text_rnn_attention_forward.1} parent=0 // pred_check_branch
    %12 = sbr.rel (0) target = $region5
  $region4: #{text_rnn_attention_forward.1} parent=0 // pred_region
    _
  $region5: #{text_rnn_attention_forward.1} parent=0 // pred_fallthru
    _
  // Predicated region
  $region6: #{text_rnn_attention_forward.1} parent=0 // pred_check
    _
  $region7: #{text_rnn_attention_forward.1} parent=0 // pred_check_branch
    %14 = sbr.rel (0) target = $region9
  $region8: #{text_rnn_attention_forward.1} parent=0 // pred_region
    _
  $region9: #{text_rnn_attention_forward.1} parent=0 // pred_fallthru
    _
  // Predicated region
  $region10: #{text_rnn_attention_forward.1} parent=0 // pred_check
    _
  $region11: #{text_rnn_attention_forward.1} parent=0 // pred_check_branch
    %16 = sbr.rel (0) target = $region13
  $region12: #{text_rnn_attention_forward.1} parent=0 // pred_region
    _
  $region13: #{text_rnn_attention_forward.1} parent=0 // pred_fallthru
    _
  // Predicated region
  $region14: #{text_rnn_attention_forward.1} parent=0 // pred_check
    _
  $region15: #{text_rnn_attention_forward.1} parent=0 // pred_check_branch
    %18 = sbr.rel (0) target = $region17
  $region16: #{text_rnn_attention_forward.1} parent=0 // pred_region
    _
  $region17: #{text_rnn_attention_forward.1} parent=0 // pred_fallthru
    _
  // Predicated region
  $region18: #{text_rnn_attention_forward.1} parent=0 // pred_check
    _
  $region19: #{text_rnn_attention_forward.1} parent=0 // pred_check_branch
    %20 = sbr.rel (0) target = $region21
  $region20: #{text_rnn_attention_forward.1} parent=0 // pred_region
    _
  $region21: #{text_rnn_attention_forward.1} parent=0 // pred_fallthru
    _
  %p22 = scmp.eq.s32.totalorder 0, 0
  // Predicated region
  $region22: #{text_rnn_attention_forward.1} parent=0 // pred_check
    %p23 = pneg %p22
  $region23: #{text_rnn_attention_forward.1} parent=0 // pred_check_branch
    %25 = sbr.rel (%p23) target = $region25
  $region24: #{text_rnn_attention_forward.1} parent=0 // pred_region
    %26 = vst [vmem:[#allocation2] sm:$0xff] 0.0
    %27 = vst [vmem:[#allocation3] sm:$0xff] 0.0
    %28 = vst [vmem:[#allocation4] sm:$0xff] 0.0
  $region25: #{text_rnn_attention_forward.1} parent=0 // pred_fallthru
    _
  %v29 = vld [vmem:[%s1] sm:$0xff]
  %v30 = vld [vmem:[%s1 + $0x8] sm:$0xff]
  %v31 = vld [vmem:[%s1 + $0x10] sm:$0xff]
  %v32 = vld [vmem:[%s1 + $0x18] sm:$0xff]
  %v33 = vld [vmem:[%s1 + $0x20] sm:$0xff]
  %v34 = vld [vmem:[%s1 + $0x28] sm:$0xff]
  %v35 = vld [vmem:[%s1 + $0x30] sm:$0xff]
  %v36 = vld [vmem:[%s1 + $0x38] sm:$0xff]
  %v37 = vld [vmem:[%s1 + $0x40] sm:$0xff]
  %v38 = vld [vmem:[%s1 + $0x48] sm:$0xff]
  %v39 = vld [vmem:[%s1 + $0x50] sm:$0xff]
  %v40 = vld [vmem:[%s1 + $0x58] sm:$0xff]
  %v41 = vld [vmem:[%s1 + $0x60] sm:$0xff]
  %v42 = vld [vmem:[%s1 + $0x68] sm:$0xff]
  %v43 = vld [vmem:[%s1 + $0x70] sm:$0xff]
  %v44 = vld [vmem:[%s1 + $0x78] sm:$0xff]
  %v45 = vld [vmem:[%s1 + $0x80] sm:$0xff]
  %v46 = vld [vmem:[%s1 + $0x88] sm:$0xff]
  %v47 = vld [vmem:[%s1 + $0x90] sm:$0xff]
  %v48 = vld [vmem:[%s1 + $0x98] sm:$0xff]
  %v49 = vld [vmem:[%s1 + $0xa0] sm:$0xff]
  %v50 = vld [vmem:[%s1 + $0xa8] sm:$0xff]
  %v51 = vld [vmem:[%s1 + $0xb0] sm:$0xff]
  %v52 = vld [vmem:[%s1 + $0xb8] sm:$0xff]
  %v53 = vld [vmem:[%s1 + $0xc0] sm:$0xff]
  %v54 = vld [vmem:[%s1 + $0xc8] sm:$0xff]
  %v55 = vld [vmem:[%s1 + $0xd0] sm:$0xff]
  %v56 = vld [vmem:[%s1 + $0xd8] sm:$0xff]
  %v57 = vld [vmem:[%s1 + $0xe0] sm:$0xff]
  %v58 = vld [vmem:[%s1 + $0xe8] sm:$0xff]
  %v59 = vld [vmem:[%s1 + $0xf0] sm:$0xff]
  %v60 = vld [vmem:[%s1 + $0xf8] sm:$0xff]
  %v61 = vld [vmem:[%s2] sm:$0xf]
  %v62 = vld [vmem:[#allocation2] sm:$0xff]
  %v63 = vld [vmem:[#allocation3] sm:$0xff]
  %v64 = vld [vmem:[#allocation4] sm:$0xff]
  %v65 = vld [vmem:[%s0] sm:$0xff]
  %v66 = vld [vmem:[%s0 + $0x8] sm:$0xff]
  %v67 = vunpack.c.l.bf16 %v65
  %v68 = vunpack.c.h.bf16 %v65
  %v69 = vunpack.c.l.bf16 %v66
  %v70 = vunpack.c.h.bf16 %v66
  %v72 = vlaneseq
  %v73 = vshrl.u32 %v72, 7
  %v74 = vsub.s32 0, %v73
  %v75 = vrot.slane %v61, %v74
  %v76 = vlaneseq
  %v77 = vshrl.u32 %v76, 7
  %v78 = vsub.s32 1, %v77
  %v79 = vrot.slane %v61, %v78
  %v80 = vlaneseq
  %v81 = vshrl.u32 %v80, 7
  %v82 = vsub.s32 2, %v81
  %v83 = vrot.slane %v61, %v82
  %v84 = vlaneseq
  %v85 = vshrl.u32 %v84, 7
  %v86 = vsub.s32 3, %v85
  %v87 = vrot.slane %v61, %v86
  %v92 = vadd.f32 %v67, %v75
  %v93 = vadd.f32 %v68, %v79
  %v94 = vadd.f32 %v69, %v83
  %v95 = vadd.f32 %v70, %v87
  %v96 = vpack.c.bf16 %v62, %v62
  %v129 = vunpack.c.l.b16 %v29
  %v130 = vunpack.c.h.b16 %v29
  %v131 = vunpack.c.l.b16 %v30
  %v132 = vunpack.c.h.b16 %v30
  %v133 = vunpack.c.l.b16 %v31
  %v134 = vunpack.c.h.b16 %v31
  %v135 = vunpack.c.l.b16 %v32
  %v136 = vunpack.c.h.b16 %v32
  %v137 = vunpack.c.l.b16 %v33
  %v138 = vunpack.c.h.b16 %v33
  %v139 = vunpack.c.l.b16 %v34
  %v140 = vunpack.c.h.b16 %v34
  %v141 = vunpack.c.l.b16 %v35
  %v142 = vunpack.c.h.b16 %v35
  %v143 = vunpack.c.l.b16 %v36
  %v144 = vunpack.c.h.b16 %v36
  %v145 = vunpack.c.l.b16 %v37
  %v146 = vunpack.c.h.b16 %v37
  %v147 = vunpack.c.l.b16 %v38
  %v148 = vunpack.c.h.b16 %v38
  %v149 = vunpack.c.l.b16 %v39
  %v150 = vunpack.c.h.b16 %v39
  %v151 = vunpack.c.l.b16 %v40
  %v152 = vunpack.c.h.b16 %v40
  %v153 = vunpack.c.l.b16 %v41
  %v154 = vunpack.c.h.b16 %v41
  %v155 = vunpack.c.l.b16 %v42
  %v156 = vunpack.c.h.b16 %v42
  %v157 = vunpack.c.l.b16 %v43
  %v158 = vunpack.c.h.b16 %v43
  %v159 = vunpack.c.l.b16 %v44
  %v160 = vunpack.c.h.b16 %v44
  %v161 = vunpack.c.l.b16 %v45
  %v162 = vunpack.c.h.b16 %v45
  %v163 = vunpack.c.l.b16 %v46
  %v164 = vunpack.c.h.b16 %v46
  %v165 = vunpack.c.l.b16 %v47
  %v166 = vunpack.c.h.b16 %v47
  %v167 = vunpack.c.l.b16 %v48
  %v168 = vunpack.c.h.b16 %v48
  %v169 = vunpack.c.l.b16 %v49
  %v170 = vunpack.c.h.b16 %v49
  %v171 = vunpack.c.l.b16 %v50
  %v172 = vunpack.c.h.b16 %v50
  %v173 = vunpack.c.l.b16 %v51
  %v174 = vunpack.c.h.b16 %v51
  %v175 = vunpack.c.l.b16 %v52
  %v176 = vunpack.c.h.b16 %v52
  %v177 = vunpack.c.l.b16 %v53
  %v178 = vunpack.c.h.b16 %v53
  %v179 = vunpack.c.l.b16 %v54
  %v180 = vunpack.c.h.b16 %v54
  %v181 = vunpack.c.l.b16 %v55
  %v182 = vunpack.c.h.b16 %v55
  %v183 = vunpack.c.l.b16 %v56
  %v184 = vunpack.c.h.b16 %v56
  %v185 = vunpack.c.l.b16 %v57
  %v186 = vunpack.c.h.b16 %v57
  %v187 = vunpack.c.l.b16 %v58
  %v188 = vunpack.c.h.b16 %v58
  %v189 = vunpack.c.l.b16 %v59
  %v190 = vunpack.c.h.b16 %v59
  %v191 = vunpack.c.l.b16 %v60
  %v192 = vunpack.c.h.b16 %v60
  %v193 = vpack.c.b16 %v133, %v129
  %v194 = vpack.c.b16 %v134, %v130
  %v195 = vpack.c.b16 %v135, %v131
  %v196 = vpack.c.b16 %v136, %v132
  %v197 = vpack.c.b16 %v141, %v137
  %v198 = vpack.c.b16 %v142, %v138
  %v199 = vpack.c.b16 %v143, %v139
  %v200 = vpack.c.b16 %v144, %v140
  %v201 = vpack.c.b16 %v149, %v145
  %v202 = vpack.c.b16 %v150, %v146
  %v203 = vpack.c.b16 %v151, %v147
  %v204 = vpack.c.b16 %v152, %v148
  %v205 = vpack.c.b16 %v157, %v153
  %v206 = vpack.c.b16 %v158, %v154
  %v207 = vpack.c.b16 %v159, %v155
  %v208 = vpack.c.b16 %v160, %v156
  %v209 = vpack.c.b16 %v165, %v161
  %v210 = vpack.c.b16 %v166, %v162
  %v211 = vpack.c.b16 %v167, %v163
  %v212 = vpack.c.b16 %v168, %v164
  %v213 = vpack.c.b16 %v173, %v169
  %v214 = vpack.c.b16 %v174, %v170
  %v215 = vpack.c.b16 %v175, %v171
  %v216 = vpack.c.b16 %v176, %v172
  %v217 = vpack.c.b16 %v181, %v177
  %v218 = vpack.c.b16 %v182, %v178
  %v219 = vpack.c.b16 %v183, %v179
  %v220 = vpack.c.b16 %v184, %v180
  %v221 = vpack.c.b16 %v189, %v185
  %v222 = vpack.c.b16 %v190, %v186
  %v223 = vpack.c.b16 %v191, %v187
  %v224 = vpack.c.b16 %v192, %v188
  %257 = vmatprep.subr.bf16.mxu0 %v194
  %258 = vmatpush1.bf16.msra.mxu0 %v193
  %259 = vmatprep.subr.bf16.mxu0 %v198
  %260 = vmatpush1.bf16.msra.mxu0 %v197
  %261 = vmatprep.subr.bf16.mxu0 %v202
  %262 = vmatpush1.bf16.msra.mxu0 %v201
  %263 = vmatprep.subr.bf16.mxu0 %v206
  %264 = vmatpush1.bf16.msra.mxu0 %v205
  %265 = vmatprep.subr.bf16.mxu0 %v210
  %266 = vmatpush1.bf16.msra.mxu0 %v209
  %267 = vmatprep.subr.bf16.mxu0 %v214
  %268 = vmatpush1.bf16.msra.mxu0 %v213
  %269 = vmatprep.subr.bf16.mxu0 %v218
  %270 = vmatpush1.bf16.msra.mxu0 %v217
  %271 = vmatprep.subr.bf16.mxu0 %v222
  %272 = vmatpush1.bf16.msra.mxu0 %v221
  %273 = vmatprep.subr.bf16.mxu0 0
  %274 = vmatpush1.bf16.msra.mxu0 0
  %275 = vmatprep.subr.bf16.mxu0 0
  %276 = vmatpush1.bf16.msra.mxu0 0
  %277 = vmatprep.subr.bf16.mxu0 0
  %278 = vmatpush1.bf16.msra.mxu0 0
  %279 = vmatprep.subr.bf16.mxu0 0
  %280 = vmatpush1.bf16.msra.mxu0 0
  %281 = vmatprep.subr.bf16.mxu0 0
  %282 = vmatpush1.bf16.msra.mxu0 0
  %283 = vmatprep.subr.bf16.mxu0 0
  %284 = vmatpush1.bf16.msra.mxu0 0
  %285 = vmatprep.subr.bf16.mxu0 0
  %286 = vmatpush1.bf16.msra.mxu0 0
  %287 = vmatprep.subr.bf16.mxu0 0
  %288 = vmatpush1.bf16.msra.mxu0 0
  %289 = vmatprep.mubr.bf16.mxu0 0
  %290 = vmatmul.mubr.bf16.gmra.mrb[0].mxu0 %v96
  %v291 = vpop.f32.mrb[0].mxu0
  %v292 = vadd.f32 0.0, %v291
  %v293 = vpop.f32.mrb[0].mxu0
  %v294 = vadd.f32 0.0, %v293
  %v295 = vpop.f32.mrb[0].mxu0
  %v296 = vpop.f32.mrb[0].mxu0
  %297 = vdwg.mxu0
  %298 = vmatprep.subr.bf16.mxu0 %v196
  %299 = vmatpush1.bf16.msra.mxu0 %v195
  %300 = vmatprep.subr.bf16.mxu0 %v200
  %301 = vmatpush1.bf16.msra.mxu0 %v199
  %302 = vmatprep.subr.bf16.mxu0 %v204
  %303 = vmatpush1.bf16.msra.mxu0 %v203
  %304 = vmatprep.subr.bf16.mxu0 %v208
  %305 = vmatpush1.bf16.msra.mxu0 %v207
  %306 = vmatprep.subr.bf16.mxu0 %v212
  %307 = vmatpush1.bf16.msra.mxu0 %v211
  %308 = vmatprep.subr.bf16.mxu0 %v216
  %309 = vmatpush1.bf16.msra.mxu0 %v215
  %310 = vmatprep.subr.bf16.mxu0 %v220
  %311 = vmatpush1.bf16.msra.mxu0 %v219
  %312 = vmatprep.subr.bf16.mxu0 %v224
  %313 = vmatpush1.bf16.msra.mxu0 %v223
  %314 = vmatprep.subr.bf16.mxu0 0
  %315 = vmatpush1.bf16.msra.mxu0 0
  %316 = vmatprep.subr.bf16.mxu0 0
  %317 = vmatpush1.bf16.msra.mxu0 0
  %318 = vmatprep.subr.bf16.mxu0 0
  %319 = vmatpush1.bf16.msra.mxu0 0
  %320 = vmatprep.subr.bf16.mxu0 0
  %321 = vmatpush1.bf16.msra.mxu0 0
  %322 = vmatprep.subr.bf16.mxu0 0
  %323 = vmatpush1.bf16.msra.mxu0 0
  %324 = vmatprep.subr.bf16.mxu0 0
  %325 = vmatpush1.bf16.msra.mxu0 0
  %326 = vmatprep.subr.bf16.mxu0 0
  %327 = vmatpush1.bf16.msra.mxu0 0
  %328 = vmatprep.subr.bf16.mxu0 0
  %329 = vmatpush1.bf16.msra.mxu0 0
  %330 = vmatprep.mubr.bf16.mxu0 0
  %331 = vmatmul.mubr.bf16.gmra.mrb[0].mxu0 %v96
  %v332 = vpop.f32.mrb[0].mxu0
  %v333 = vadd.f32 0.0, %v332
  %v334 = vpop.f32.mrb[0].mxu0
  %v335 = vadd.f32 0.0, %v334
  %v336 = vpop.f32.mrb[0].mxu0
  %v337 = vpop.f32.mrb[0].mxu0
  %338 = vdwg.mxu0
  %v339 = vadd.f32 %v92, %v292
  %v340 = vadd.f32 %v93, %v294
  %v341 = vadd.f32 %v94, %v333
  %v342 = vadd.f32 %v95, %v335
  %v343 = vmul.f32 %v339, 0.5
  %v344 = vtanh.pop %v343
  %v345 = vadd.f32 %v344, 1.0
  %v346 = vmul.f32 %v345, 0.5
  %v347 = vmul.f32 %v340, 0.5
  %v348 = vtanh.pop %v347
  %v349 = vadd.f32 %v348, 1.0
  %v350 = vmul.f32 %v349, 0.5
  %v351 = vtanh.pop %v341
  %v352 = vmul.f32 %v342, 0.5
  %v353 = vtanh.pop %v352
  %v354 = vadd.f32 %v353, 1.0
  %v355 = vmul.f32 %v354, 0.5
  %v356 = vmul.f32 %v350, %v63
  %v357 = vmul.f32 %v346, %v351
  %v358 = vadd.f32 %v356, %v357
  %v359 = vtanh.pop %v358
  %v360 = vmul.f32 %v355, %v359
  %v361 = vadd.f32 %v64, %v360
  %s362 = scalar_lea.vmem %s0, 16
  %v363 = vld [vmem:[%s362] sm:$0xff]
  %v364 = vld [vmem:[%s362 + $0x8] sm:$0xff]
  %v365 = vunpack.c.l.bf16 %v363
  %v366 = vunpack.c.h.bf16 %v363
  %v367 = vunpack.c.l.bf16 %v364
  %v368 = vunpack.c.h.bf16 %v364
  %v369 = vadd.f32 %v365, %v75
  %v370 = vadd.f32 %v366, %v79
  %v371 = vadd.f32 %v367, %v83
  %v372 = vadd.f32 %v368, %v87
  %v373 = vpack.c.bf16 %v360, %v360
  %374 = vmatprep.subr.bf16.mxu0 %v194
  %375 = vmatpush1.bf16.msra.mxu0 %v193
  %376 = vmatprep.subr.bf16.mxu0 %v198
  %377 = vmatpush1.bf16.msra.mxu0 %v197
  %378 = vmatprep.subr.bf16.mxu0 %v202
  %379 = vmatpush1.bf16.msra.mxu0 %v201
  %380 = vmatprep.subr.bf16.mxu0 %v206
  %381 = vmatpush1.bf16.msra.mxu0 %v205
  %382 = vmatprep.subr.bf16.mxu0 %v210
  %383 = vmatpush1.bf16.msra.mxu0 %v209
  %384 = vmatprep.subr.bf16.mxu0 %v214
  %385 = vmatpush1.bf16.msra.mxu0 %v213
  %386 = vmatprep.subr.bf16.mxu0 %v218
  %387 = vmatpush1.bf16.msra.mxu0 %v217
  %388 = vmatprep.subr.bf16.mxu0 %v222
  %389 = vmatpush1.bf16.msra.mxu0 %v221
  %390 = vmatprep.subr.bf16.mxu0 0
  %391 = vmatpush1.bf16.msra.mxu0 0
  %392 = vmatprep.subr.bf16.mxu0 0
  %393 = vmatpush1.bf16.msra.mxu0 0
  %394 = vmatprep.subr.bf16.mxu0 0
  %395 = vmatpush1.bf16.msra.mxu0 0
  %396 = vmatprep.subr.bf16.mxu0 0
  %397 = vmatpush1.bf16.msra.mxu0 0
  %398 = vmatprep.subr.bf16.mxu0 0
  %399 = vmatpush1.bf16.msra.mxu0 0
  %400 = vmatprep.subr.bf16.mxu0 0
  %401 = vmatpush1.bf16.msra.mxu0 0
  %402 = vmatprep.subr.bf16.mxu0 0
  %403 = vmatpush1.bf16.msra.mxu0 0
  %404 = vmatprep.subr.bf16.mxu0 0
  %405 = vmatpush1.bf16.msra.mxu0 0
  %406 = vmatprep.mubr.bf16.mxu0 0
  %407 = vmatmul.mubr.bf16.gmra.mrb[0].mxu0 %v373
  %v408 = vpop.f32.mrb[0].mxu0
  %v409 = vadd.f32 0.0, %v408
  %v410 = vpop.f32.mrb[0].mxu0
  %v411 = vadd.f32 0.0, %v410
  %v412 = vpop.f32.mrb[0].mxu0
  %v413 = vpop.f32.mrb[0].mxu0
  %414 = vdwg.mxu0
  %415 = vmatprep.subr.bf16.mxu0 %v196
  %416 = vmatpush1.bf16.msra.mxu0 %v195
  %417 = vmatprep.subr.bf16.mxu0 %v200
  %418 = vmatpush1.bf16.msra.mxu0 %v199
  %419 = vmatprep.subr.bf16.mxu0 %v204
  %420 = vmatpush1.bf16.msra.mxu0 %v203
  %421 = vmatprep.subr.bf16.mxu0 %v208
  %422 = vmatpush1.bf16.msra.mxu0 %v207
  %423 = vmatprep.subr.bf16.mxu0 %v212
  %424 = vmatpush1.bf16.msra.mxu0 %v211
  %425 = vmatprep.subr.bf16.mxu0 %v216
  %426 = vmatpush1.bf16.msra.mxu0 %v215
  %427 = vmatprep.subr.bf16.mxu0 %v220
  %428 = vmatpush1.bf16.msra.mxu0 %v219
  %429 = vmatprep.subr.bf16.mxu0 %v224
  %430 = vmatpush1.bf16.msra.mxu0 %v223
  %431 = vmatprep.subr.bf16.mxu0 0
  %432 = vmatpush1.bf16.msra.mxu0 0
  %433 = vmatprep.subr.bf16.mxu0 0
  %434 = vmatpush1.bf16.msra.mxu0 0
  %435 = vmatprep.subr.bf16.mxu0 0
  %436 = vmatpush1.bf16.msra.mxu0 0
  %437 = vmatprep.subr.bf16.mxu0 0
  %438 = vmatpush1.bf16.msra.mxu0 0
  %439 = vmatprep.subr.bf16.mxu0 0
  %440 = vmatpush1.bf16.msra.mxu0 0
  %441 = vmatprep.subr.bf16.mxu0 0
  %442 = vmatpush1.bf16.msra.mxu0 0
  %443 = vmatprep.subr.bf16.mxu0 0
  %444 = vmatpush1.bf16.msra.mxu0 0
  %445 = vmatprep.subr.bf16.mxu0 0
  %446 = vmatpush1.bf16.msra.mxu0 0
  %447 = vmatprep.mubr.bf16.mxu0 0
  %448 = vmatmul.mubr.bf16.gmra.mrb[0].mxu0 %v373
  %v449 = vpop.f32.mrb[0].mxu0
  %v450 = vadd.f32 0.0, %v449
  %v451 = vpop.f32.mrb[0].mxu0
  %v452 = vadd.f32 0.0, %v451
  %v453 = vpop.f32.mrb[0].mxu0
  %v454 = vpop.f32.mrb[0].mxu0
  %455 = vdwg.mxu0
  %v456 = vadd.f32 %v369, %v409
  %v457 = vadd.f32 %v370, %v411
  %v458 = vadd.f32 %v371, %v450
  %v459 = vadd.f32 %v372, %v452
  %v460 = vmul.f32 %v456, 0.5
  %v461 = vtanh.pop %v460
  %v462 = vadd.f32 %v461, 1.0
  %v463 = vmul.f32 %v462, 0.5
  %v464 = vmul.f32 %v457, 0.5
  %v465 = vtanh.pop %v464
  %v466 = vadd.f32 %v465, 1.0
  %v467 = vmul.f32 %v466, 0.5
  %v468 = vtanh.pop %v458
  %v469 = vmul.f32 %v459, 0.5
  %v470 = vtanh.pop %v469
  %v471 = vadd.f32 %v470, 1.0
  %v472 = vmul.f32 %v471, 0.5
  %v473 = vmul.f32 %v467, %v358
  %v474 = vmul.f32 %v463, %v468
  %v475 = vadd.f32 %v473, %v474
  %v476 = vtanh.pop %v475
  %v477 = vmul.f32 %v472, %v476
  %v478 = vadd.f32 %v361, %v477
  %s479 = scalar_lea.vmem %s0, 32
  %v480 = vld [vmem:[%s479] sm:$0xff]
  %v481 = vld [vmem:[%s479 + $0x8] sm:$0xff]
  %v482 = vunpack.c.l.bf16 %v480
  %v483 = vunpack.c.h.bf16 %v480
  %v484 = vunpack.c.l.bf16 %v481
  %v485 = vunpack.c.h.bf16 %v481
  %v486 = vadd.f32 %v482, %v75
  %v487 = vadd.f32 %v483, %v79
  %v488 = vadd.f32 %v484, %v83
  %v489 = vadd.f32 %v485, %v87
  %v490 = vpack.c.bf16 %v477, %v477
  %491 = vmatprep.subr.bf16.mxu0 %v194
  %492 = vmatpush1.bf16.msra.mxu0 %v193
  %493 = vmatprep.subr.bf16.mxu0 %v198
  %494 = vmatpush1.bf16.msra.mxu0 %v197
  %495 = vmatprep.subr.bf16.mxu0 %v202
  %496 = vmatpush1.bf16.msra.mxu0 %v201
  %497 = vmatprep.subr.bf16.mxu0 %v206
  %498 = vmatpush1.bf16.msra.mxu0 %v205
  %499 = vmatprep.subr.bf16.mxu0 %v210
  %500 = vmatpush1.bf16.msra.mxu0 %v209
  %501 = vmatprep.subr.bf16.mxu0 %v214
  %502 = vmatpush1.bf16.msra.mxu0 %v213
  %503 = vmatprep.subr.bf16.mxu0 %v218
  %504 = vmatpush1.bf16.msra.mxu0 %v217
  %505 = vmatprep.subr.bf16.mxu0 %v222
  %506 = vmatpush1.bf16.msra.mxu0 %v221
  %507 = vmatprep.subr.bf16.mxu0 0
  %508 = vmatpush1.bf16.msra.mxu0 0
  %509 = vmatprep.subr.bf16.mxu0 0
  %510 = vmatpush1.bf16.msra.mxu0 0
  %511 = vmatprep.subr.bf16.mxu0 0
  %512 = vmatpush1.bf16.msra.mxu0 0
  %513 = vmatprep.subr.bf16.mxu0 0
  %514 = vmatpush1.bf16.msra.mxu0 0
  %515 = vmatprep.subr.bf16.mxu0 0
  %516 = vmatpush1.bf16.msra.mxu0 0
  %517 = vmatprep.subr.bf16.mxu0 0
  %518 = vmatpush1.bf16.msra.mxu0 0
  %519 = vmatprep.subr.bf16.mxu0 0
  %520 = vmatpush1.bf16.msra.mxu0 0
  %521 = vmatprep.subr.bf16.mxu0 0
  %522 = vmatpush1.bf16.msra.mxu0 0
  %523 = vmatprep.mubr.bf16.mxu0 0
  %524 = vmatmul.mubr.bf16.gmra.mrb[0].mxu0 %v490
  %v525 = vpop.f32.mrb[0].mxu0
  %v526 = vadd.f32 0.0, %v525
  %v527 = vpop.f32.mrb[0].mxu0
  %v528 = vadd.f32 0.0, %v527
  %v529 = vpop.f32.mrb[0].mxu0
  %v530 = vpop.f32.mrb[0].mxu0
  %531 = vdwg.mxu0
  %532 = vmatprep.subr.bf16.mxu0 %v196
  %533 = vmatpush1.bf16.msra.mxu0 %v195
  %534 = vmatprep.subr.bf16.mxu0 %v200
  %535 = vmatpush1.bf16.msra.mxu0 %v199
  %536 = vmatprep.subr.bf16.mxu0 %v204
  %537 = vmatpush1.bf16.msra.mxu0 %v203
  %538 = vmatprep.subr.bf16.mxu0 %v208
  %539 = vmatpush1.bf16.msra.mxu0 %v207
  %540 = vmatprep.subr.bf16.mxu0 %v212
  %541 = vmatpush1.bf16.msra.mxu0 %v211
  %542 = vmatprep.subr.bf16.mxu0 %v216
  %543 = vmatpush1.bf16.msra.mxu0 %v215
  %544 = vmatprep.subr.bf16.mxu0 %v220
  %545 = vmatpush1.bf16.msra.mxu0 %v219
  %546 = vmatprep.subr.bf16.mxu0 %v224
  %547 = vmatpush1.bf16.msra.mxu0 %v223
  %548 = vmatprep.subr.bf16.mxu0 0
  %549 = vmatpush1.bf16.msra.mxu0 0
  %550 = vmatprep.subr.bf16.mxu0 0
  %551 = vmatpush1.bf16.msra.mxu0 0
  %552 = vmatprep.subr.bf16.mxu0 0
  %553 = vmatpush1.bf16.msra.mxu0 0
  %554 = vmatprep.subr.bf16.mxu0 0
  %555 = vmatpush1.bf16.msra.mxu0 0
  %556 = vmatprep.subr.bf16.mxu0 0
  %557 = vmatpush1.bf16.msra.mxu0 0
  %558 = vmatprep.subr.bf16.mxu0 0
  %559 = vmatpush1.bf16.msra.mxu0 0
  %560 = vmatprep.subr.bf16.mxu0 0
  %561 = vmatpush1.bf16.msra.mxu0 0
  %562 = vmatprep.subr.bf16.mxu0 0
  %563 = vmatpush1.bf16.msra.mxu0 0
  %564 = vmatprep.mubr.bf16.mxu0 0
  %565 = vmatmul.mubr.bf16.gmra.mrb[0].mxu0 %v490
  %v566 = vpop.f32.mrb[0].mxu0
  %v567 = vadd.f32 0.0, %v566
  %v568 = vpop.f32.mrb[0].mxu0
  %v569 = vadd.f32 0.0, %v568
  %v570 = vpop.f32.mrb[0].mxu0
  %v571 = vpop.f32.mrb[0].mxu0
  %572 = vdwg.mxu0
  %v573 = vadd.f32 %v486, %v526
  %v574 = vadd.f32 %v487, %v528
  %v575 = vadd.f32 %v488, %v567
  %v576 = vadd.f32 %v489, %v569
  %v577 = vmul.f32 %v573, 0.5
  %v578 = vtanh.pop %v577
  %v579 = vadd.f32 %v578, 1.0
  %v580 = vmul.f32 %v579, 0.5
  %v581 = vmul.f32 %v574, 0.5
  %v582 = vtanh.pop %v581
  %v583 = vadd.f32 %v582, 1.0
  %v584 = vmul.f32 %v583, 0.5
  %v585 = vtanh.pop %v575
  %v586 = vmul.f32 %v576, 0.5
  %v587 = vtanh.pop %v586
  %v588 = vadd.f32 %v587, 1.0
  %v589 = vmul.f32 %v588, 0.5
  %v590 = vmul.f32 %v584, %v475
  %v591 = vmul.f32 %v580, %v585
  %v592 = vadd.f32 %v590, %v591
  %v593 = vtanh.pop %v592
  %v594 = vmul.f32 %v589, %v593
  %v595 = vadd.f32 %v478, %v594
  %s596 = scalar_lea.vmem %s0, 48
  %v597 = vld [vmem:[%s596] sm:$0xff]
  %v598 = vld [vmem:[%s596 + $0x8] sm:$0xff]
  %v599 = vunpack.c.l.bf16 %v597
  %v600 = vunpack.c.h.bf16 %v597
  %v601 = vunpack.c.l.bf16 %v598
  %v602 = vunpack.c.h.bf16 %v598
  %v603 = vadd.f32 %v599, %v75
  %v604 = vadd.f32 %v600, %v79
  %v605 = vadd.f32 %v601, %v83
  %v606 = vadd.f32 %v602, %v87
  %v607 = vpack.c.bf16 %v594, %v594
  %608 = vmatprep.subr.bf16.mxu0 %v194
  %609 = vmatpush1.bf16.msra.mxu0 %v193
  %610 = vmatprep.subr.bf16.mxu0 %v198
  %611 = vmatpush1.bf16.msra.mxu0 %v197
  %612 = vmatprep.subr.bf16.mxu0 %v202
  %613 = vmatpush1.bf16.msra.mxu0 %v201
  %614 = vmatprep.subr.bf16.mxu0 %v206
  %615 = vmatpush1.bf16.msra.mxu0 %v205
  %616 = vmatprep.subr.bf16.mxu0 %v210
  %617 = vmatpush1.bf16.msra.mxu0 %v209
  %618 = vmatprep.subr.bf16.mxu0 %v214
  %619 = vmatpush1.bf16.msra.mxu0 %v213
  %620 = vmatprep.subr.bf16.mxu0 %v218
  %621 = vmatpush1.bf16.msra.mxu0 %v217
  %622 = vmatprep.subr.bf16.mxu0 %v222
  %623 = vmatpush1.bf16.msra.mxu0 %v221
  %624 = vmatprep.subr.bf16.mxu0 0
  %625 = vmatpush1.bf16.msra.mxu0 0
  %626 = vmatprep.subr.bf16.mxu0 0
  %627 = vmatpush1.bf16.msra.mxu0 0
  %628 = vmatprep.subr.bf16.mxu0 0
  %629 = vmatpush1.bf16.msra.mxu0 0
  %630 = vmatprep.subr.bf16.mxu0 0
  %631 = vmatpush1.bf16.msra.mxu0 0
  %632 = vmatprep.subr.bf16.mxu0 0
  %633 = vmatpush1.bf16.msra.mxu0 0
  %634 = vmatprep.subr.bf16.mxu0 0
  %635 = vmatpush1.bf16.msra.mxu0 0
  %636 = vmatprep.subr.bf16.mxu0 0
  %637 = vmatpush1.bf16.msra.mxu0 0
  %638 = vmatprep.subr.bf16.mxu0 0
  %639 = vmatpush1.bf16.msra.mxu0 0
  %640 = vmatprep.mubr.bf16.mxu0 0
  %641 = vmatmul.mubr.bf16.gmra.mrb[0].mxu0 %v607
  %v642 = vpop.f32.mrb[0].mxu0
  %v643 = vadd.f32 0.0, %v642
  %v644 = vpop.f32.mrb[0].mxu0
  %v645 = vadd.f32 0.0, %v644
  %v646 = vpop.f32.mrb[0].mxu0
  %v647 = vpop.f32.mrb[0].mxu0
  %648 = vdwg.mxu0
  %649 = vmatprep.subr.bf16.mxu0 %v196
  %650 = vmatpush1.bf16.msra.mxu0 %v195
  %651 = vmatprep.subr.bf16.mxu0 %v200
  %652 = vmatpush1.bf16.msra.mxu0 %v199
  %653 = vmatprep.subr.bf16.mxu0 %v204
  %654 = vmatpush1.bf16.msra.mxu0 %v203
  %655 = vmatprep.subr.bf16.mxu0 %v208
  %656 = vmatpush1.bf16.msra.mxu0 %v207
  %657 = vmatprep.subr.bf16.mxu0 %v212
  %658 = vmatpush1.bf16.msra.mxu0 %v211
  %659 = vmatprep.subr.bf16.mxu0 %v216
  %660 = vmatpush1.bf16.msra.mxu0 %v215
  %661 = vmatprep.subr.bf16.mxu0 %v220
  %662 = vmatpush1.bf16.msra.mxu0 %v219
  %663 = vmatprep.subr.bf16.mxu0 %v224
  %664 = vmatpush1.bf16.msra.mxu0 %v223
  %665 = vmatprep.subr.bf16.mxu0 0
  %666 = vmatpush1.bf16.msra.mxu0 0
  %667 = vmatprep.subr.bf16.mxu0 0
  %668 = vmatpush1.bf16.msra.mxu0 0
  %669 = vmatprep.subr.bf16.mxu0 0
  %670 = vmatpush1.bf16.msra.mxu0 0
  %671 = vmatprep.subr.bf16.mxu0 0
  %672 = vmatpush1.bf16.msra.mxu0 0
  %673 = vmatprep.subr.bf16.mxu0 0
  %674 = vmatpush1.bf16.msra.mxu0 0
  %675 = vmatprep.subr.bf16.mxu0 0
  %676 = vmatpush1.bf16.msra.mxu0 0
  %677 = vmatprep.subr.bf16.mxu0 0
  %678 = vmatpush1.bf16.msra.mxu0 0
  %679 = vmatprep.subr.bf16.mxu0 0
  %680 = vmatpush1.bf16.msra.mxu0 0
  %681 = vmatprep.mubr.bf16.mxu0 0
  %682 = vmatmul.mubr.bf16.gmra.mrb[0].mxu0 %v607
  %v683 = vpop.f32.mrb[0].mxu0
  %v684 = vadd.f32 0.0, %v683
  %v685 = vpop.f32.mrb[0].mxu0
  %v686 = vadd.f32 0.0, %v685
  %v687 = vpop.f32.mrb[0].mxu0
  %v688 = vpop.f32.mrb[0].mxu0
  %689 = vdwg.mxu0
  %v690 = vadd.f32 %v603, %v643
  %v691 = vadd.f32 %v604, %v645
  %v692 = vadd.f32 %v605, %v684
  %v693 = vadd.f32 %v606, %v686
  %v694 = vmul.f32 %v690, 0.5
  %v695 = vtanh.pop %v694
  %v696 = vadd.f32 %v695, 1.0
  %v697 = vmul.f32 %v696, 0.5
  %v698 = vmul.f32 %v691, 0.5
  %v699 = vtanh.pop %v698
  %v700 = vadd.f32 %v699, 1.0
  %v701 = vmul.f32 %v700, 0.5
  %v702 = vtanh.pop %v692
  %v703 = vmul.f32 %v693, 0.5
  %v704 = vtanh.pop %v703
  %v705 = vadd.f32 %v704, 1.0
  %v706 = vmul.f32 %v705, 0.5
  %v707 = vmul.f32 %v701, %v592
  %v708 = vmul.f32 %v697, %v702
  %v709 = vadd.f32 %v707, %v708
  %v710 = vtanh.pop %v709
  %v711 = vmul.f32 %v706, %v710
  %v712 = vadd.f32 %v595, %v711
  %s713 = scalar_lea.vmem %s0, 64
  %v714 = vld [vmem:[%s713] sm:$0xff]
  %v715 = vld [vmem:[%s713 + $0x8] sm:$0xff]
  %v716 = vunpack.c.l.bf16 %v714
  %v717 = vunpack.c.h.bf16 %v714
  %v718 = vunpack.c.l.bf16 %v715
  %v719 = vunpack.c.h.bf16 %v715
  %v720 = vadd.f32 %v716, %v75
  %v721 = vadd.f32 %v717, %v79
  %v722 = vadd.f32 %v718, %v83
  %v723 = vadd.f32 %v719, %v87
  %v724 = vpack.c.bf16 %v711, %v711
  %725 = vmatprep.subr.bf16.mxu0 %v194
  %726 = vmatpush1.bf16.msra.mxu0 %v193
  %727 = vmatprep.subr.bf16.mxu0 %v198
  %728 = vmatpush1.bf16.msra.mxu0 %v197
  %729 = vmatprep.subr.bf16.mxu0 %v202
  %730 = vmatpush1.bf16.msra.mxu0 %v201
  %731 = vmatprep.subr.bf16.mxu0 %v206
  %732 = vmatpush1.bf16.msra.mxu0 %v205
  %733 = vmatprep.subr.bf16.mxu0 %v210
  %734 = vmatpush1.bf16.msra.mxu0 %v209
  %735 = vmatprep.subr.bf16.mxu0 %v214
  %736 = vmatpush1.bf16.msra.mxu0 %v213
  %737 = vmatprep.subr.bf16.mxu0 %v218
  %738 = vmatpush1.bf16.msra.mxu0 %v217
  %739 = vmatprep.subr.bf16.mxu0 %v222
  %740 = vmatpush1.bf16.msra.mxu0 %v221
  %741 = vmatprep.subr.bf16.mxu0 0
  %742 = vmatpush1.bf16.msra.mxu0 0
  %743 = vmatprep.subr.bf16.mxu0 0
  %744 = vmatpush1.bf16.msra.mxu0 0
  %745 = vmatprep.subr.bf16.mxu0 0
  %746 = vmatpush1.bf16.msra.mxu0 0
  %747 = vmatprep.subr.bf16.mxu0 0
  %748 = vmatpush1.bf16.msra.mxu0 0
  %749 = vmatprep.subr.bf16.mxu0 0
  %750 = vmatpush1.bf16.msra.mxu0 0
  %751 = vmatprep.subr.bf16.mxu0 0
  %752 = vmatpush1.bf16.msra.mxu0 0
  %753 = vmatprep.subr.bf16.mxu0 0
  %754 = vmatpush1.bf16.msra.mxu0 0
  %755 = vmatprep.subr.bf16.mxu0 0
  %756 = vmatpush1.bf16.msra.mxu0 0
  %757 = vmatprep.mubr.bf16.mxu0 0
  %758 = vmatmul.mubr.bf16.gmra.mrb[0].mxu0 %v724
  %v759 = vpop.f32.mrb[0].mxu0
  %v760 = vadd.f32 0.0, %v759
  %v761 = vpop.f32.mrb[0].mxu0
  %v762 = vadd.f32 0.0, %v761
  %v763 = vpop.f32.mrb[0].mxu0
  %v764 = vpop.f32.mrb[0].mxu0
  %765 = vdwg.mxu0
  %766 = vmatprep.subr.bf16.mxu0 %v196
  %767 = vmatpush1.bf16.msra.mxu0 %v195
  %768 = vmatprep.subr.bf16.mxu0 %v200
  %769 = vmatpush1.bf16.msra.mxu0 %v199
  %770 = vmatprep.subr.bf16.mxu0 %v204
  %771 = vmatpush1.bf16.msra.mxu0 %v203
  %772 = vmatprep.subr.bf16.mxu0 %v208
  %773 = vmatpush1.bf16.msra.mxu0 %v207
  %774 = vmatprep.subr.bf16.mxu0 %v212
  %775 = vmatpush1.bf16.msra.mxu0 %v211
  %776 = vmatprep.subr.bf16.mxu0 %v216
  %777 = vmatpush1.bf16.msra.mxu0 %v215
  %778 = vmatprep.subr.bf16.mxu0 %v220
  %779 = vmatpush1.bf16.msra.mxu0 %v219
  %780 = vmatprep.subr.bf16.mxu0 %v224
  %781 = vmatpush1.bf16.msra.mxu0 %v223
  %782 = vmatprep.subr.bf16.mxu0 0
  %783 = vmatpush1.bf16.msra.mxu0 0
  %784 = vmatprep.subr.bf16.mxu0 0
  %785 = vmatpush1.bf16.msra.mxu0 0
  %786 = vmatprep.subr.bf16.mxu0 0
  %787 = vmatpush1.bf16.msra.mxu0 0
  %788 = vmatprep.subr.bf16.mxu0 0
  %789 = vmatpush1.bf16.msra.mxu0 0
  %790 = vmatprep.subr.bf16.mxu0 0
  %791 = vmatpush1.bf16.msra.mxu0 0
  %792 = vmatprep.subr.bf16.mxu0 0
  %793 = vmatpush1.bf16.msra.mxu0 0
  %794 = vmatprep.subr.bf16.mxu0 0
  %795 = vmatpush1.bf16.msra.mxu0 0
  %796 = vmatprep.subr.bf16.mxu0 0
  %797 = vmatpush1.bf16.msra.mxu0 0
  %798 = vmatprep.mubr.bf16.mxu0 0
  %799 = vmatmul.mubr.bf16.gmra.mrb[0].mxu0 %v724
  %v800 = vpop.f32.mrb[0].mxu0
  %v801 = vadd.f32 0.0, %v800
  %v802 = vpop.f32.mrb[0].mxu0
  %v803 = vadd.f32 0.0, %v802
  %v804 = vpop.f32.mrb[0].mxu0
  %v805 = vpop.f32.mrb[0].mxu0
  %806 = vdwg.mxu0
  %v807 = vadd.f32 %v720, %v760
  %v808 = vadd.f32 %v721, %v762
  %v809 = vadd.f32 %v722, %v801
  %v810 = vadd.f32 %v723, %v803
  %v811 = vmul.f32 %v807, 0.5
  %v812 = vtanh.pop %v811
  %v813 = vadd.f32 %v812, 1.0
  %v814 = vmul.f32 %v813, 0.5
  %v815 = vmul.f32 %v808, 0.5
  %v816 = vtanh.pop %v815
  %v817 = vadd.f32 %v816, 1.0
  %v818 = vmul.f32 %v817, 0.5
  %v819 = vtanh.pop %v809
  %v820 = vmul.f32 %v810, 0.5
  %v821 = vtanh.pop %v820
  %v822 = vadd.f32 %v821, 1.0
  %v823 = vmul.f32 %v822, 0.5
  %v824 = vmul.f32 %v818, %v709
  %v825 = vmul.f32 %v814, %v819
  %v826 = vadd.f32 %v824, %v825
  %v827 = vtanh.pop %v826
  %v828 = vmul.f32 %v823, %v827
  %v829 = vadd.f32 %v712, %v828
  %s830 = scalar_lea.vmem %s0, 80
  %v831 = vld [vmem:[%s830] sm:$0xff]
  %v832 = vld [vmem:[%s830 + $0x8] sm:$0xff]
  %v833 = vunpack.c.l.bf16 %v831
  %v834 = vunpack.c.h.bf16 %v831
  %v835 = vunpack.c.l.bf16 %v832
  %v836 = vunpack.c.h.bf16 %v832
  %v837 = vadd.f32 %v833, %v75
  %v838 = vadd.f32 %v834, %v79
  %v839 = vadd.f32 %v835, %v83
  %v840 = vadd.f32 %v836, %v87
  %v841 = vpack.c.bf16 %v828, %v828
  %842 = vmatprep.subr.bf16.mxu0 %v194
  %843 = vmatpush1.bf16.msra.mxu0 %v193
  %844 = vmatprep.subr.bf16.mxu0 %v198
  %845 = vmatpush1.bf16.msra.mxu0 %v197
  %846 = vmatprep.subr.bf16.mxu0 %v202
  %847 = vmatpush1.bf16.msra.mxu0 %v201
  %848 = vmatprep.subr.bf16.mxu0 %v206
  %849 = vmatpush1.bf16.msra.mxu0 %v205
  %850 = vmatprep.subr.bf16.mxu0 %v210
  %851 = vmatpush1.bf16.msra.mxu0 %v209
  %852 = vmatprep.subr.bf16.mxu0 %v214
  %853 = vmatpush1.bf16.msra.mxu0 %v213
  %854 = vmatprep.subr.bf16.mxu0 %v218
  %855 = vmatpush1.bf16.msra.mxu0 %v217
  %856 = vmatprep.subr.bf16.mxu0 %v222
  %857 = vmatpush1.bf16.msra.mxu0 %v221
  %858 = vmatprep.subr.bf16.mxu0 0
  %859 = vmatpush1.bf16.msra.mxu0 0
  %860 = vmatprep.subr.bf16.mxu0 0
  %861 = vmatpush1.bf16.msra.mxu0 0
  %862 = vmatprep.subr.bf16.mxu0 0
  %863 = vmatpush1.bf16.msra.mxu0 0
  %864 = vmatprep.subr.bf16.mxu0 0
  %865 = vmatpush1.bf16.msra.mxu0 0
  %866 = vmatprep.subr.bf16.mxu0 0
  %867 = vmatpush1.bf16.msra.mxu0 0
  %868 = vmatprep.subr.bf16.mxu0 0
  %869 = vmatpush1.bf16.msra.mxu0 0
  %870 = vmatprep.subr.bf16.mxu0 0
  %871 = vmatpush1.bf16.msra.mxu0 0
  %872 = vmatprep.subr.bf16.mxu0 0
  %873 = vmatpush1.bf16.msra.mxu0 0
  %874 = vmatprep.mubr.bf16.mxu0 0
  %875 = vmatmul.mubr.bf16.gmra.mrb[0].mxu0 %v841
  %v876 = vpop.f32.mrb[0].mxu0
  %v877 = vadd.f32 0.0, %v876
  %v878 = vpop.f32.mrb[0].mxu0
  %v879 = vadd.f32 0.0, %v878
  %v880 = vpop.f32.mrb[0].mxu0
  %v881 = vpop.f32.mrb[0].mxu0
  %882 = vdwg.mxu0
  %883 = vmatprep.subr.bf16.mxu0 %v196
  %884 = vmatpush1.bf16.msra.mxu0 %v195
  %885 = vmatprep.subr.bf16.mxu0 %v200
  %886 = vmatpush1.bf16.msra.mxu0 %v199
  %887 = vmatprep.subr.bf16.mxu0 %v204
  %888 = vmatpush1.bf16.msra.mxu0 %v203
  %889 = vmatprep.subr.bf16.mxu0 %v208
  %890 = vmatpush1.bf16.msra.mxu0 %v207
  %891 = vmatprep.subr.bf16.mxu0 %v212
  %892 = vmatpush1.bf16.msra.mxu0 %v211
  %893 = vmatprep.subr.bf16.mxu0 %v216
  %894 = vmatpush1.bf16.msra.mxu0 %v215
  %895 = vmatprep.subr.bf16.mxu0 %v220
  %896 = vmatpush1.bf16.msra.mxu0 %v219
  %897 = vmatprep.subr.bf16.mxu0 %v224
  %898 = vmatpush1.bf16.msra.mxu0 %v223
  %899 = vmatprep.subr.bf16.mxu0 0
  %900 = vmatpush1.bf16.msra.mxu0 0
  %901 = vmatprep.subr.bf16.mxu0 0
  %902 = vmatpush1.bf16.msra.mxu0 0
  %903 = vmatprep.subr.bf16.mxu0 0
  %904 = vmatpush1.bf16.msra.mxu0 0
  %905 = vmatprep.subr.bf16.mxu0 0
  %906 = vmatpush1.bf16.msra.mxu0 0
  %907 = vmatprep.subr.bf16.mxu0 0
  %908 = vmatpush1.bf16.msra.mxu0 0
  %909 = vmatprep.subr.bf16.mxu0 0
  %910 = vmatpush1.bf16.msra.mxu0 0
  %911 = vmatprep.subr.bf16.mxu0 0
  %912 = vmatpush1.bf16.msra.mxu0 0
  %913 = vmatprep.subr.bf16.mxu0 0
  %914 = vmatpush1.bf16.msra.mxu0 0
  %915 = vmatprep.mubr.bf16.mxu0 0
  %916 = vmatmul.mubr.bf16.gmra.mrb[0].mxu0 %v841
  %v917 = vpop.f32.mrb[0].mxu0
  %v918 = vadd.f32 0.0, %v917
  %v919 = vpop.f32.mrb[0].mxu0
  %v920 = vadd.f32 0.0, %v919
  %v921 = vpop.f32.mrb[0].mxu0
  %v922 = vpop.f32.mrb[0].mxu0
  %923 = vdwg.mxu0
  %v924 = vadd.f32 %v837, %v877
  %v925 = vadd.f32 %v838, %v879
  %v926 = vadd.f32 %v839, %v918
  %v927 = vadd.f32 %v840, %v920
  %v928 = vmul.f32 %v924, 0.5
  %v929 = vtanh.pop %v928
  %v930 = vadd.f32 %v929, 1.0
  %v931 = vmul.f32 %v930, 0.5
  %v932 = vmul.f32 %v925, 0.5
  %v933 = vtanh.pop %v932
  %v934 = vadd.f32 %v933, 1.0
  %v935 = vmul.f32 %v934, 0.5
  %v936 = vtanh.pop %v926
  %v937 = vmul.f32 %v927, 0.5
  %v938 = vtanh.pop %v937
  %v939 = vadd.f32 %v938, 1.0
  %v940 = vmul.f32 %v939, 0.5
  %v941 = vmul.f32 %v935, %v826
  %v942 = vmul.f32 %v931, %v936
  %v943 = vadd.f32 %v941, %v942
  %v944 = vtanh.pop %v943
  %v945 = vmul.f32 %v940, %v944
  %v946 = vadd.f32 %v829, %v945
  %s947 = scalar_lea.vmem %s0, 96
  %v948 = vld [vmem:[%s947] sm:$0xff]
  %v949 = vld [vmem:[%s947 + $0x8] sm:$0xff]
  %v950 = vunpack.c.l.bf16 %v948
  %v951 = vunpack.c.h.bf16 %v948
  %v952 = vunpack.c.l.bf16 %v949
  %v953 = vunpack.c.h.bf16 %v949
  %v954 = vadd.f32 %v950, %v75
  %v955 = vadd.f32 %v951, %v79
  %v956 = vadd.f32 %v952, %v83
  %v957 = vadd.f32 %v953, %v87
  %v958 = vpack.c.bf16 %v945, %v945
  %959 = vmatprep.subr.bf16.mxu0 %v194
  %960 = vmatpush1.bf16.msra.mxu0 %v193
  %961 = vmatprep.subr.bf16.mxu0 %v198
  %962 = vmatpush1.bf16.msra.mxu0 %v197
  %963 = vmatprep.subr.bf16.mxu0 %v202
  %964 = vmatpush1.bf16.msra.mxu0 %v201
  %965 = vmatprep.subr.bf16.mxu0 %v206
  %966 = vmatpush1.bf16.msra.mxu0 %v205
  %967 = vmatprep.subr.bf16.mxu0 %v210
  %968 = vmatpush1.bf16.msra.mxu0 %v209
  %969 = vmatprep.subr.bf16.mxu0 %v214
  %970 = vmatpush1.bf16.msra.mxu0 %v213
  %971 = vmatprep.subr.bf16.mxu0 %v218
  %972 = vmatpush1.bf16.msra.mxu0 %v217
  %973 = vmatprep.subr.bf16.mxu0 %v222
  %974 = vmatpush1.bf16.msra.mxu0 %v221
  %975 = vmatprep.subr.bf16.mxu0 0
  %976 = vmatpush1.bf16.msra.mxu0 0
  %977 = vmatprep.subr.bf16.mxu0 0
  %978 = vmatpush1.bf16.msra.mxu0 0
  %979 = vmatprep.subr.bf16.mxu0 0
  %980 = vmatpush1.bf16.msra.mxu0 0
  %981 = vmatprep.subr.bf16.mxu0 0
  %982 = vmatpush1.bf16.msra.mxu0 0
  %983 = vmatprep.subr.bf16.mxu0 0
  %984 = vmatpush1.bf16.msra.mxu0 0
  %985 = vmatprep.subr.bf16.mxu0 0
  %986 = vmatpush1.bf16.msra.mxu0 0
  %987 = vmatprep.subr.bf16.mxu0 0
  %988 = vmatpush1.bf16.msra.mxu0 0
  %989 = vmatprep.subr.bf16.mxu0 0
  %990 = vmatpush1.bf16.msra.mxu0 0
  %991 = vmatprep.mubr.bf16.mxu0 0
  %992 = vmatmul.mubr.bf16.gmra.mrb[0].mxu0 %v958
  %v993 = vpop.f32.mrb[0].mxu0
  %v994 = vadd.f32 0.0, %v993
  %v995 = vpop.f32.mrb[0].mxu0
  %v996 = vadd.f32 0.0, %v995
  %v997 = vpop.f32.mrb[0].mxu0
  %v998 = vpop.f32.mrb[0].mxu0
  %999 = vdwg.mxu0
  %1000 = vmatprep.subr.bf16.mxu0 %v196
  %1001 = vmatpush1.bf16.msra.mxu0 %v195
  %1002 = vmatprep.subr.bf16.mxu0 %v200
  %1003 = vmatpush1.bf16.msra.mxu0 %v199
  %1004 = vmatprep.subr.bf16.mxu0 %v204
  %1005 = vmatpush1.bf16.msra.mxu0 %v203
  %1006 = vmatprep.subr.bf16.mxu0 %v208
  %1007 = vmatpush1.bf16.msra.mxu0 %v207
  %1008 = vmatprep.subr.bf16.mxu0 %v212
  %1009 = vmatpush1.bf16.msra.mxu0 %v211
  %1010 = vmatprep.subr.bf16.mxu0 %v216
  %1011 = vmatpush1.bf16.msra.mxu0 %v215
  %1012 = vmatprep.subr.bf16.mxu0 %v220
  %1013 = vmatpush1.bf16.msra.mxu0 %v219
  %1014 = vmatprep.subr.bf16.mxu0 %v224
  %1015 = vmatpush1.bf16.msra.mxu0 %v223
  %1016 = vmatprep.subr.bf16.mxu0 0
  %1017 = vmatpush1.bf16.msra.mxu0 0
  %1018 = vmatprep.subr.bf16.mxu0 0
  %1019 = vmatpush1.bf16.msra.mxu0 0
  %1020 = vmatprep.subr.bf16.mxu0 0
  %1021 = vmatpush1.bf16.msra.mxu0 0
  %1022 = vmatprep.subr.bf16.mxu0 0
  %1023 = vmatpush1.bf16.msra.mxu0 0
  %1024 = vmatprep.subr.bf16.mxu0 0
  %1025 = vmatpush1.bf16.msra.mxu0 0
  %1026 = vmatprep.subr.bf16.mxu0 0
  %1027 = vmatpush1.bf16.msra.mxu0 0
  %1028 = vmatprep.subr.bf16.mxu0 0
  %1029 = vmatpush1.bf16.msra.mxu0 0
  %1030 = vmatprep.subr.bf16.mxu0 0
  %1031 = vmatpush1.bf16.msra.mxu0 0
  %1032 = vmatprep.mubr.bf16.mxu0 0
  %1033 = vmatmul.mubr.bf16.gmra.mrb[0].mxu0 %v958
  %v1034 = vpop.f32.mrb[0].mxu0
  %v1035 = vadd.f32 0.0, %v1034
  %v1036 = vpop.f32.mrb[0].mxu0
  %v1037 = vadd.f32 0.0, %v1036
  %v1038 = vpop.f32.mrb[0].mxu0
  %v1039 = vpop.f32.mrb[0].mxu0
  %1040 = vdwg.mxu0
  %v1041 = vadd.f32 %v954, %v994
  %v1042 = vadd.f32 %v955, %v996
  %v1043 = vadd.f32 %v956, %v1035
  %v1044 = vadd.f32 %v957, %v1037
  %v1045 = vmul.f32 %v1041, 0.5
  %v1046 = vtanh.pop %v1045
  %v1047 = vadd.f32 %v1046, 1.0
  %v1048 = vmul.f32 %v1047, 0.5
  %v1049 = vmul.f32 %v1042, 0.5
  %v1050 = vtanh.pop %v1049
  %v1051 = vadd.f32 %v1050, 1.0
  %v1052 = vmul.f32 %v1051, 0.5
  %v1053 = vtanh.pop %v1043
  %v1054 = vmul.f32 %v1044, 0.5
  %v1055 = vtanh.pop %v1054
  %v1056 = vadd.f32 %v1055, 1.0
  %v1057 = vmul.f32 %v1056, 0.5
  %v1058 = vmul.f32 %v1052, %v943
  %v1059 = vmul.f32 %v1048, %v1053
  %v1060 = vadd.f32 %v1058, %v1059
  %v1061 = vtanh.pop %v1060
  %v1062 = vmul.f32 %v1057, %v1061
  %v1063 = vadd.f32 %v946, %v1062
  %s1064 = scalar_lea.vmem %s0, 112
  %v1065 = vld [vmem:[%s1064] sm:$0xff]
  %v1066 = vld [vmem:[%s1064 + $0x8] sm:$0xff]
  %v1067 = vunpack.c.l.bf16 %v1065
  %v1068 = vunpack.c.h.bf16 %v1065
  %v1069 = vunpack.c.l.bf16 %v1066
  %v1070 = vunpack.c.h.bf16 %v1066
  %v1071 = vadd.f32 %v1067, %v75
  %v1072 = vadd.f32 %v1068, %v79
  %v1073 = vadd.f32 %v1069, %v83
  %v1074 = vadd.f32 %v1070, %v87
  %v1075 = vpack.c.bf16 %v1062, %v1062
  %1076 = vmatprep.subr.bf16.mxu0 %v194
  %1077 = vmatpush1.bf16.msra.mxu0 %v193
  %1078 = vmatprep.subr.bf16.mxu0 %v198
  %1079 = vmatpush1.bf16.msra.mxu0 %v197
  %1080 = vmatprep.subr.bf16.mxu0 %v202
  %1081 = vmatpush1.bf16.msra.mxu0 %v201
  %1082 = vmatprep.subr.bf16.mxu0 %v206
  %1083 = vmatpush1.bf16.msra.mxu0 %v205
  %1084 = vmatprep.subr.bf16.mxu0 %v210
  %1085 = vmatpush1.bf16.msra.mxu0 %v209
  %1086 = vmatprep.subr.bf16.mxu0 %v214
  %1087 = vmatpush1.bf16.msra.mxu0 %v213
  %1088 = vmatprep.subr.bf16.mxu0 %v218
  %1089 = vmatpush1.bf16.msra.mxu0 %v217
  %1090 = vmatprep.subr.bf16.mxu0 %v222
  %1091 = vmatpush1.bf16.msra.mxu0 %v221
  %1092 = vmatprep.subr.bf16.mxu0 0
  %1093 = vmatpush1.bf16.msra.mxu0 0
  %1094 = vmatprep.subr.bf16.mxu0 0
  %1095 = vmatpush1.bf16.msra.mxu0 0
  %1096 = vmatprep.subr.bf16.mxu0 0
  %1097 = vmatpush1.bf16.msra.mxu0 0
  %1098 = vmatprep.subr.bf16.mxu0 0
  %1099 = vmatpush1.bf16.msra.mxu0 0
  %1100 = vmatprep.subr.bf16.mxu0 0
  %1101 = vmatpush1.bf16.msra.mxu0 0
  %1102 = vmatprep.subr.bf16.mxu0 0
  %1103 = vmatpush1.bf16.msra.mxu0 0
  %1104 = vmatprep.subr.bf16.mxu0 0
  %1105 = vmatpush1.bf16.msra.mxu0 0
  %1106 = vmatprep.subr.bf16.mxu0 0
  %1107 = vmatpush1.bf16.msra.mxu0 0
  %1108 = vmatprep.mubr.bf16.mxu0 0
  %1109 = vmatmul.mubr.bf16.gmra.mrb[0].mxu0 %v1075
  %v1110 = vpop.f32.mrb[0].mxu0
  %v1111 = vadd.f32 0.0, %v1110
  %v1112 = vpop.f32.mrb[0].mxu0
  %v1113 = vadd.f32 0.0, %v1112
  %v1114 = vpop.f32.mrb[0].mxu0
  %v1115 = vpop.f32.mrb[0].mxu0
  %1116 = vdwg.mxu0
  %1117 = vmatprep.subr.bf16.mxu0 %v196
  %1118 = vmatpush1.bf16.msra.mxu0 %v195
  %1119 = vmatprep.subr.bf16.mxu0 %v200
  %1120 = vmatpush1.bf16.msra.mxu0 %v199
  %1121 = vmatprep.subr.bf16.mxu0 %v204
  %1122 = vmatpush1.bf16.msra.mxu0 %v203
  %1123 = vmatprep.subr.bf16.mxu0 %v208
  %1124 = vmatpush1.bf16.msra.mxu0 %v207
  %1125 = vmatprep.subr.bf16.mxu0 %v212
  %1126 = vmatpush1.bf16.msra.mxu0 %v211
  %1127 = vmatprep.subr.bf16.mxu0 %v216
  %1128 = vmatpush1.bf16.msra.mxu0 %v215
  %1129 = vmatprep.subr.bf16.mxu0 %v220
  %1130 = vmatpush1.bf16.msra.mxu0 %v219
  %1131 = vmatprep.subr.bf16.mxu0 %v224
  %1132 = vmatpush1.bf16.msra.mxu0 %v223
  %1133 = vmatprep.subr.bf16.mxu0 0
  %1134 = vmatpush1.bf16.msra.mxu0 0
  %1135 = vmatprep.subr.bf16.mxu0 0
  %1136 = vmatpush1.bf16.msra.mxu0 0
  %1137 = vmatprep.subr.bf16.mxu0 0
  %1138 = vmatpush1.bf16.msra.mxu0 0
  %1139 = vmatprep.subr.bf16.mxu0 0
  %1140 = vmatpush1.bf16.msra.mxu0 0
  %1141 = vmatprep.subr.bf16.mxu0 0
  %1142 = vmatpush1.bf16.msra.mxu0 0
  %1143 = vmatprep.subr.bf16.mxu0 0
  %1144 = vmatpush1.bf16.msra.mxu0 0
  %1145 = vmatprep.subr.bf16.mxu0 0
  %1146 = vmatpush1.bf16.msra.mxu0 0
  %1147 = vmatprep.subr.bf16.mxu0 0
  %1148 = vmatpush1.bf16.msra.mxu0 0
  %1149 = vmatprep.mubr.bf16.mxu0 0
  %1150 = vmatmul.mubr.bf16.gmra.mrb[0].mxu0 %v1075
  %v1151 = vpop.f32.mrb[0].mxu0
  %v1152 = vadd.f32 0.0, %v1151
  %v1153 = vpop.f32.mrb[0].mxu0
  %v1154 = vadd.f32 0.0, %v1153
  %v1155 = vpop.f32.mrb[0].mxu0
  %v1156 = vpop.f32.mrb[0].mxu0
  %1157 = vdwg.mxu0
  %v1158 = vadd.f32 %v1071, %v1111
  %v1159 = vadd.f32 %v1072, %v1113
  %v1160 = vadd.f32 %v1073, %v1152
  %v1161 = vadd.f32 %v1074, %v1154
  %v1162 = vmul.f32 %v1158, 0.5
  %v1163 = vtanh.pop %v1162
  %v1164 = vadd.f32 %v1163, 1.0
  %v1165 = vmul.f32 %v1164, 0.5
  %v1166 = vmul.f32 %v1159, 0.5
  %v1167 = vtanh.pop %v1166
  %v1168 = vadd.f32 %v1167, 1.0
  %v1169 = vmul.f32 %v1168, 0.5
  %v1170 = vtanh.pop %v1160
  %v1171 = vmul.f32 %v1161, 0.5
  %v1172 = vtanh.pop %v1171
  %v1173 = vadd.f32 %v1172, 1.0
  %v1174 = vmul.f32 %v1173, 0.5
  %v1175 = vmul.f32 %v1169, %v1060
  %v1176 = vmul.f32 %v1165, %v1170
  %v1177 = vadd.f32 %v1175, %v1176
  %v1178 = vtanh.pop %v1177
  %v1179 = vmul.f32 %v1174, %v1178
  %v1180 = vadd.f32 %v1063, %v1179
  %1181 = vst [vmem:[#allocation2] sm:$0xff] %v1179
  %1182 = vst [vmem:[#allocation3] sm:$0xff] %v1177
  %1183 = vst [vmem:[#allocation4] sm:$0xff] %v1180
  // Predicated region
  $region26: #{text_rnn_attention_forward.1} parent=0 // pred_check
    %p1184 = pneg %p22
  $region27: #{text_rnn_attention_forward.1} parent=0 // pred_check_branch
    %1186 = sbr.rel (%p1184) target = $region29
  $region28: #{text_rnn_attention_forward.1} parent=0 // pred_region
    %v1187 = vld [vmem:[#allocation4] sm:$0xff]
    %v1188 = vld [vmem:[%s3] sm:$0x1]
    %v1190 = vlaneseq
    %v1191 = vshrl.u32 %v1190, 7
    %v1192 = vsub.s32 0, %v1191
    %v1193 = vrot.slane %v1188, %v1192
    %v1195 = vmul.f32 %v1187, %v1193
    %1196 = vadd.xlane.f32.xlu0 %v1195
    %v1197 = vpop.xlane.xlu0 %1196
    %s1198 = sld [smem:[#allocation5]]
    %v1199 = vstv %s1198
    %v1200 = vadd.f32 %v1197, %v1199
    %v1201 = vmul.f32 %v1200, 0.5
    %v1202 = vtanh.pop %v1201
    %v1203 = vadd.f32 %v1202, 1.0
    %v1204 = vmul.f32 %v1203, 0.5
    %vm1205 = vcmask 7168
    %1206 = vst.msk [vmem:[%s5] sm:$0xff] %vm1205, %v1204
  $region29: #{text_rnn_attention_forward.1} parent=0 // pred_fallthru
    _
  // Predicated region
  $region30: #{text_rnn_attention_forward.1} parent=0 // pred_check
    _
  $region31: #{text_rnn_attention_forward.1} parent=0 // pred_check_branch
    %1208 = sbr.rel (0) target = $region33
  $region32: #{text_rnn_attention_forward.1} parent=0 // pred_region
    _
  $region33: #{text_rnn_attention_forward.1} parent=0 // pred_fallthru
    _
  // Predicated region
  $region34: #{text_rnn_attention_forward.1} parent=0 // pred_check
    _
  $region35: #{text_rnn_attention_forward.1} parent=0 // pred_check_branch
    %1210 = sbr.rel (0) target = $region37
  $region36: #{text_rnn_attention_forward.1} parent=0 // pred_region
    _
  $region37: #{text_rnn_attention_forward.1} parent=0 // pred_fallthru
    _

</llo_original>
